<compile_context>
chip_gen: v7x
topology: tpu7x:2x2x1
jax: 0.10.0
libtpu: 0.0.40
codegen_flags: <defaults>
</compile_context>

<pallas_src>
import functools

import jax
import jax.numpy as jnp
from jax.experimental import pallas as pl
from jax.experimental.pallas import tpu as pltpu


# --------------------------------------------------------------------------------------
# Kernel A: LayerNorm + masked left / right projections (row-tiled, memory-bound)
# --------------------------------------------------------------------------------------
def _ln_proj_kernel(x_ref, m_ref, g_ref, b_ref, wl_ref, bl_ref, wr_ref, br_ref,
                    left_ref, right_ref, *, eps: float):
    # x_ref: (TM, D) tile of flattened (batch*seq*res) rows.
    x = x_ref[...].astype(jnp.float32)

    mu = jnp.mean(x, axis=-1, keepdims=True)
    xc = x - mu
    var = jnp.mean(xc * xc, axis=-1, keepdims=True)
    xn = xc * jax.lax.rsqrt(var + eps)
    xn = xn * g_ref[...].astype(jnp.float32) + b_ref[...].astype(jnp.float32)

    m = m_ref[...].astype(jnp.float32)          # (TM, 1)

    # Keep MXU operands in the parameter dtype (bf16 fast path if params/acts are bf16),
    # accumulate in f32.
    xn_c = xn.astype(wl_ref.dtype)
    left = jnp.dot(xn_c, wl_ref[...],
                   preferred_element_type=jnp.float32) + bl_ref[...].astype(jnp.float32)
    right = jnp.dot(xn_c, wr_ref[...],
                    preferred_element_type=jnp.float32) + br_ref[...].astype(jnp.float32)

    left_ref[...] = (m * left).astype(left_ref.dtype)
    right_ref[...] = (m * right).astype(right_ref.dtype)


# --------------------------------------------------------------------------------------
# Kernel B: outer-product mean over the MSA axis + output projection + mask-norm
# --------------------------------------------------------------------------------------
def _opm_kernel(left_ref, right_ref, inv_ref, wo_ref, bo_ref, out_ref,
                acc_ref, flat_ref, *, n_outer: int):
    # left_ref : (1, TS, TI*C)   residues i-tile, channels packed along lanes
    # right_ref: (1, TS, TJ*C)
    # inv_ref  : (1, TI, TJ, 1)  1 / (mask-pair norm + eps), precomputed (tiny)
    # wo_ref   : (C*C, O)        output projection, feature order (e*C + c)
    # bo_ref   : (1, O)
    # acc_ref  : (TI*C, TJ*C) f32 scratch — acc[(i,c), (j,e)] = sum_s L[s,i,c] R[s,j,e]
    # flat_ref : (TI*TJ, C*C) f32 scratch — acc reorganised to [(i,j), (e,c)]
    s_idx = pl.program_id(3)

    @pl.when(s_idx == 0)
    def _init():
        acc_ref[...] = jnp.zeros_like(acc_ref)

    l2 = left_ref[0]                        # (TS, TI*C)
    r2 = right_ref[0]                       # (TS, TJ*C)
    # Contract over the MSA/sequence axis: acc += l2^T @ r2   (single MXU matmul)
    acc_ref[...] += jax.lax.dot_general(
        l2, r2,
        dimension_numbers=(((0,), (0,)), ((), ())),
        preferred_element_type=jnp.float32)

    @pl.when(s_idx == pl.num_programs(3) - 1)
    def _finalize():
        c = n_outer
        tic, tjc = acc_ref.shape
        ti, tj = tic // c, tjc // c

        # Reorganise acc[(i,c),(j,e)] -> flat[(i,j),(e,c)] using only 2-D transposes
        # and row-major reshapes (layout-safe), so the projection is one big matmul.
        for i in range(ti):
            blk = acc_ref[pl.ds(i * c, c), :]                  # (C, TJ*C) = [c, (j,e)]
            flat_ref[pl.ds(i * tj, tj), :] = blk.T.reshape(tj, c * c)   # [j, (e,c)]

        o = jnp.dot(flat_ref[...].astype(wo_ref.dtype), wo_ref[...],
                    preferred_element_type=jnp.float32)        # (TI*TJ, O)
        o = o + bo_ref[...].astype(jnp.float32)
        o = o.reshape(1, ti, tj, o.shape[-1])
        o = o * inv_ref[...].astype(jnp.float32)               # broadcast over O
        out_ref[...] = o.astype(out_ref.dtype)


# --------------------------------------------------------------------------------------
# Wrapper
# --------------------------------------------------------------------------------------
def outer_product_mean_ffb(msa_act, msa_mask, params, *, is_training: bool = False,
                           tile_m: int = 1024, tile_i: int = 32, tile_j: int = 32,
                           tile_s: int = 512, ln_eps: float = 1e-5,
                           norm_eps: float = 1e-3):
    """Pallas implementation of OuterProductMeanFFB.forward.

    msa_act : [..., S, R, msa_dim]
    msa_mask: [..., S, R]
    params  : dict with ln_scale/ln_offset (D,), left_w/right_w (D,C), left_b/right_b (C,),
              output_w (C, C, O), output_b (O,)
    returns : [..., R, R, O]
    """
    del is_training
    *lead, S, R, D = msa_act.shape
    B = 1
    for d in lead:
        B *= int(d)
    C = params["left_w"].shape[1]
    O = params["output_b"].shape[-1]
    dtype = msa_act.dtype

    x = msa_act.reshape(B, S, R, D)
    msk = msa_mask.reshape(B, S, R)

    # ----------------- kernel A: LN + masked left/right projections -----------------
    M = B * S * R
    x2 = x.reshape(M, D)
    m2 = msk.reshape(M, 1).astype(dtype)
    tm = M if tile_m >= M else tile_m          # tile_m must be a multiple of 8 when < M
    grid_a = (pl.cdiv(M, tm),)

    ln_g = params["ln_scale"].reshape(1, D)
    ln_b = params["ln_offset"].reshape(1, D)
    w_l = params["left_w"]
    b_l = params["left_b"].reshape(1, C)
    w_r = params["right_w"]
    b_r = params["right_b"].reshape(1, C)

    left2d, right2d = pl.pallas_call(
        functools.partial(_ln_proj_kernel, eps=ln_eps),
        out_shape=(jax.ShapeDtypeStruct((M, C), dtype),
                   jax.ShapeDtypeStruct((M, C), dtype)),
        grid_spec=pltpu.PrefetchScalarGridSpec(
            num_scalar_prefetch=0,
            grid=grid_a,
            in_specs=[
                pl.BlockSpec((tm, D), lambda i: (i, 0)),   # activations tile
                pl.BlockSpec((tm, 1), lambda i: (i, 0)),   # mask (per row)
                pl.BlockSpec((1, D), lambda i: (0, 0)),    # ln scale
                pl.BlockSpec((1, D), lambda i: (0, 0)),    # ln offset
                pl.BlockSpec((D, C), lambda i: (0, 0)),    # left  W
                pl.BlockSpec((1, C), lambda i: (0, 0)),    # left  b
                pl.BlockSpec((D, C), lambda i: (0, 0)),    # right W
                pl.BlockSpec((1, C), lambda i: (0, 0)),    # right b
            ],
            out_specs=(pl.BlockSpec((tm, C), lambda i: (i, 0)),
                       pl.BlockSpec((tm, C), lambda i: (i, 0))),
        ),
        compiler_params=pltpu.CompilerParams(
            dimension_semantics=("parallel",),
            vmem_limit_bytes=48 * 1024 * 1024,
        ),
    )(x2, m2, ln_g, ln_b, w_l, b_l, w_r, b_r)

    # Lane-dense packing for kernel B: [B, S, R*C] so a residue tile is a contiguous
    # TI*C slab on the 128-wide lane axis (pure metadata reshape, no HBM copy).
    left = left2d.reshape(B, S, R * C)
    right = right2d.reshape(B, S, R * C)

    # Mask-pair normalisation (tiny: B*R*R elements) computed once in f32 and passed in
    # as a [B, R, R, 1] reciprocal so the kernel's finalize is a single broadcast-multiply.
    mf = msk.astype(jnp.float32)
    norm = jnp.einsum("bsi,bsj->bij", mf, mf)
    inv4 = (1.0 / (norm + norm_eps))[..., None]            # [B, R, R, 1] f32

    # ----------------- kernel B: outer-product mean + output projection -------------
    ti = R if tile_i >= R else tile_i                      # (tile_i*C must be mult of 128)
    tj = R if tile_j >= R else tile_j
    if tile_s >= S or S % tile_s != 0:
        ts = S          # the reduction axis must never be ragged (would corrupt the sum)
    else:
        ts = tile_s
    grid_b = (B, pl.cdiv(R, ti), pl.cdiv(R, tj), S // ts)

    # Output projection with feature order (e*C + c) to match the in-kernel reorg.
    wo_perm = jnp.transpose(params["output_w"], (1, 0, 2)).reshape(C * C, O)
    bo = params["output_b"].reshape(1, O)

    out = pl.pallas_call(
        functools.partial(_opm_kernel, n_outer=C),
        out_shape=jax.ShapeDtypeStruct((B, R, R, O), dtype),
        grid_spec=pltpu.PrefetchScalarGridSpec(
            num_scalar_prefetch=0,
            grid=grid_b,
            in_specs=[
                pl.BlockSpec((1, ts, ti * C), lambda b, i, j, s: (b, s, i)),  # left
                pl.BlockSpec((1, ts, tj * C), lambda b, i, j, s: (b, s, j)),  # right
                pl.BlockSpec((1, ti, tj, 1), lambda b, i, j, s: (b, i, j, 0)),  # 1/norm
                pl.BlockSpec((C * C, O), lambda b, i, j, s: (0, 0)),          # W_out
                pl.BlockSpec((1, O), lambda b, i, j, s: (0, 0)),              # b_out
            ],
            out_specs=pl.BlockSpec((1, ti, tj, O), lambda b, i, j, s: (b, i, j, 0)),
            scratch_shapes=[
                pltpu.VMEM((ti * C, tj * C), jnp.float32),   # outer-product accumulator
                pltpu.VMEM((ti * tj, C * C), jnp.float32),   # reorganised for projection
            ],
        ),
        compiler_params=pltpu.CompilerParams(
            dimension_semantics=("parallel", "parallel", "parallel", "arbitrary"),
            vmem_limit_bytes=48 * 1024 * 1024,
        ),
    )(left, right, inv4, wo_perm, bo)

    return out.reshape(*lead, R, R, O)


# --------------------------------------------------------------------------------------
# Pure-JAX reference
# --------------------------------------------------------------------------------------
def _reference(msa_act, msa_mask, params, ln_eps=1e-5, norm_eps=1e-3):
    x = msa_act.astype(jnp.float32)
    mu = jnp.mean(x, axis=-1, keepdims=True)
    var = jnp.mean((x - mu) ** 2, axis=-1, keepdims=True)
    xn = (x - mu) * jax.lax.rsqrt(var + ln_eps)
    xn = xn * params["ln_scale"] + params["ln_offset"]
    m = msa_mask[..., None].astype(jnp.float32)
    left = m * (xn @ params["left_w"] + params["left_b"])
    right = m * (xn @ params["right_w"] + params["right_b"])
    act = jnp.einsum("...sic,...sje->...ijce", left, right)
    act = act.reshape(act.shape[:-2] + (-1,))
    wo = params["output_w"].reshape(-1, params["output_w"].shape[-1])
    act = act @ wo + params["output_b"]
    mf = msa_mask.astype(jnp.float32)
    norm = jnp.einsum("...si,...sj->...ij", mf, mf)
    return (act / (norm[..., None] + norm_eps)).astype(msa_act.dtype)


if __name__ == "__main__":
    key = jax.random.PRNGKey(0)

    # Small shapes consistent with the module:
    #   msa_act [batch, n_seq, n_res, msa_dim], msa_mask [batch, n_seq, n_res]
    B, S, R = 2, 8, 16
    msa_dim = 32
    num_outer_channel = 8
    num_output_channel = 16

    keys = jax.random.split(key, 10)
    msa_act = jax.random.normal(keys[0], (B, S, R, msa_dim), dtype=jnp.float32)
    msa_mask = (jax.random.uniform(keys[1], (B, S, R)) > 0.1).astype(jnp.float32)

    params = {
        "ln_scale": 1.0 + 0.05 * jax.random.normal(keys[2], (msa_dim,), jnp.float32),
        "ln_offset": 0.05 * jax.random.normal(keys[3], (msa_dim,), jnp.float32),
        "left_w": jax.random.normal(keys[4], (msa_dim, num_outer_channel), jnp.float32)
                  * (1.0 / msa_dim) ** 0.5,
        "left_b": 0.01 * jax.random.normal(keys[5], (num_outer_channel,), jnp.float32),
        "right_w": jax.random.normal(keys[6], (msa_dim, num_outer_channel), jnp.float32)
                   * (1.0 / msa_dim) ** 0.5,
        "right_b": 0.01 * jax.random.normal(keys[7], (num_outer_channel,), jnp.float32),
        # AF2 'final' init is zeros; use small nonzero values so the kernel path is
        # actually exercised by the check.
        "output_w": 0.02 * jax.random.normal(
            keys[8], (num_outer_channel, num_outer_channel, num_output_channel),
            jnp.float32),
        "output_b": 0.01 * jax.random.normal(keys[9], (num_output_channel,), jnp.float32),
    }

    out = outer_product_mean_ffb(msa_act, msa_mask, params)
    out = jax.block_until_ready(out)

    ref = _reference(msa_act, msa_mask, params)
    assert out.shape == (B, R, R, num_output_channel), out.shape
    assert out.dtype == msa_act.dtype
    max_err = jnp.max(jnp.abs(out.astype(jnp.float32) - ref.astype(jnp.float32)))
    assert jnp.allclose(out.astype(jnp.float32), ref.astype(jnp.float32),
                        atol=5e-4, rtol=5e-4), f"max err {max_err}"

    print("KERNEL_OK")
</pallas_src>

<mosaic_0001>
module attributes {stable_mosaic.version = 11 : i64} {
  func.func @_ln_proj_kernel(%arg0: i32, %arg1: memref<256x32xf32, #tpu.memory_space<vmem>>, %arg2: memref<256x1xf32, #tpu.memory_space<vmem>>, %arg3: memref<1x32xf32, #tpu.memory_space<vmem>>, %arg4: memref<1x32xf32, #tpu.memory_space<vmem>>, %arg5: memref<32x8xf32, #tpu.memory_space<vmem>>, %arg6: memref<1x8xf32, #tpu.memory_space<vmem>>, %arg7: memref<32x8xf32, #tpu.memory_space<vmem>>, %arg8: memref<1x8xf32, #tpu.memory_space<vmem>>, %arg9: memref<256x8xf32, #tpu.memory_space<vmem>>, %arg10: memref<256x8xf32, #tpu.memory_space<vmem>>) attributes {dimension_semantics = [#tpu.dimension_semantics<parallel>], iteration_bounds = array<i64: 1>, scalar_prefetch = 0 : i64, scratch_operands = 0 : i64, tpu.core_type = #tpu.core_type<tc>, window_params = [{transform_indices = @transform_0, window_bounds = array<i64: 256, 32>}, {transform_indices = @transform_1, window_bounds = array<i64: 256, 1>}, {pipeline_mode = #tpu.pipeline_mode<synchronous>, transform_indices = @transform_2, window_bounds = array<i64: 1, 32>}, {pipeline_mode = #tpu.pipeline_mode<synchronous>, transform_indices = @transform_3, window_bounds = array<i64: 1, 32>}, {pipeline_mode = #tpu.pipeline_mode<synchronous>, transform_indices = @transform_4, window_bounds = array<i64: 32, 8>}, {pipeline_mode = #tpu.pipeline_mode<synchronous>, transform_indices = @transform_5, window_bounds = array<i64: 1, 8>}, {pipeline_mode = #tpu.pipeline_mode<synchronous>, transform_indices = @transform_6, window_bounds = array<i64: 32, 8>}, {pipeline_mode = #tpu.pipeline_mode<synchronous>, transform_indices = @transform_7, window_bounds = array<i64: 1, 8>}, {transform_indices = @transform_8, window_bounds = array<i64: 256, 8>}, {transform_indices = @transform_9, window_bounds = array<i64: 256, 8>}]} {
    %c0 = arith.constant 0 : index
    %c0_0 = arith.constant 0 : index
    %0 = vector.load %arg1[%c0, %c0_0] : memref<256x32xf32, #tpu.memory_space<vmem>>, vector<256x32xf32>
    %cst = arith.constant dense<0.000000e+00> : vector<256xf32>
    %1 = vector.multi_reduction <add>, %0, %cst [1] : vector<256x32xf32> to vector<256xf32>
    %2 = vector.shape_cast %1 : vector<256xf32> to vector<256x1xf32>
    %cst_1 = arith.constant 3.200000e+01 : f32
    %3 = vector.broadcast %cst_1 : f32 to vector<256x1xf32>
    %4 = arith.divf %2, %3 : vector<256x1xf32>
    %5 = vector.broadcast %4 : vector<256x1xf32> to vector<256x32xf32>
    %6 = arith.subf %0, %5 : vector<256x32xf32>
    %7 = arith.mulf %6, %6 : vector<256x32xf32>
    %cst_2 = arith.constant dense<0.000000e+00> : vector<256xf32>
    %8 = vector.multi_reduction <add>, %7, %cst_2 [1] : vector<256x32xf32> to vector<256xf32>
    %9 = vector.shape_cast %8 : vector<256xf32> to vector<256x1xf32>
    %cst_3 = arith.constant 3.200000e+01 : f32
    %10 = vector.broadcast %cst_3 : f32 to vector<256x1xf32>
    %11 = arith.divf %9, %10 : vector<256x1xf32>
    %cst_4 = arith.constant 9.99999974E-6 : f32
    %12 = vector.broadcast %cst_4 : f32 to vector<256x1xf32>
    %13 = arith.addf %11, %12 : vector<256x1xf32>
    %14 = math.rsqrt %13 : vector<256x1xf32>
    %15 = vector.broadcast %14 : vector<256x1xf32> to vector<256x32xf32>
    %16 = arith.mulf %6, %15 : vector<256x32xf32>
    %c0_5 = arith.constant 0 : index
    %c0_6 = arith.constant 0 : index
    %17 = vector.load %arg3[%c0_5, %c0_6] : memref<1x32xf32, #tpu.memory_space<vmem>>, vector<1x32xf32>
    %18 = vector.broadcast %17 : vector<1x32xf32> to vector<256x32xf32>
    %19 = arith.mulf %16, %18 : vector<256x32xf32>
    %c0_7 = arith.constant 0 : index
    %c0_8 = arith.constant 0 : index
    %20 = vector.load %arg4[%c0_7, %c0_8] : memref<1x32xf32, #tpu.memory_space<vmem>>, vector<1x32xf32>
    %21 = vector.broadcast %20 : vector<1x32xf32> to vector<256x32xf32>
    %22 = arith.addf %19, %21 : vector<256x32xf32>
    %c0_9 = arith.constant 0 : index
    %c0_10 = arith.constant 0 : index
    %23 = vector.load %arg2[%c0_9, %c0_10] : memref<256x1xf32, #tpu.memory_space<vmem>>, vector<256x1xf32>
    %c0_11 = arith.constant 0 : index
    %c0_12 = arith.constant 0 : index
    %24 = vector.load %arg5[%c0_11, %c0_12] : memref<32x8xf32, #tpu.memory_space<vmem>>, vector<32x8xf32>
    %cst_13 = arith.constant dense<0.000000e+00> : vector<256x8xf32>
    %25 = tpu.matmul %22, %24, %cst_13 {dimension_numbers = #tpu.dot_dimension_numbers<[1], [0], [0], [1], [0, 0, 1, 1], [], []>} : vector<256x32xf32>, vector<32x8xf32>, vector<256x8xf32> -> vector<256x8xf32>
    %c0_14 = arith.constant 0 : index
    %c0_15 = arith.constant 0 : index
    %26 = vector.load %arg6[%c0_14, %c0_15] : memref<1x8xf32, #tpu.memory_space<vmem>>, vector<1x8xf32>
    %27 = vector.broadcast %26 : vector<1x8xf32> to vector<256x8xf32>
    %28 = arith.addf %25, %27 : vector<256x8xf32>
    %c0_16 = arith.constant 0 : index
    %c0_17 = arith.constant 0 : index
    %29 = vector.load %arg7[%c0_16, %c0_17] : memref<32x8xf32, #tpu.memory_space<vmem>>, vector<32x8xf32>
    %cst_18 = arith.constant dense<0.000000e+00> : vector<256x8xf32>
    %30 = tpu.matmul %22, %29, %cst_18 {dimension_numbers = #tpu.dot_dimension_numbers<[1], [0], [0], [1], [0, 0, 1, 1], [], []>} : vector<256x32xf32>, vector<32x8xf32>, vector<256x8xf32> -> vector<256x8xf32>
    %c0_19 = arith.constant 0 : index
    %c0_20 = arith.constant 0 : index
    %31 = vector.load %arg8[%c0_19, %c0_20] : memref<1x8xf32, #tpu.memory_space<vmem>>, vector<1x8xf32>
    %32 = vector.broadcast %31 : vector<1x8xf32> to vector<256x8xf32>
    %33 = arith.addf %30, %32 : vector<256x8xf32>
    %34 = vector.broadcast %23 : vector<256x1xf32> to vector<256x8xf32>
    %35 = arith.mulf %34, %28 : vector<256x8xf32>
    %c0_21 = arith.constant 0 : index
    %c0_22 = arith.constant 0 : index
    %36 = vector.load %arg9[%c0_21, %c0_22] : memref<256x8xf32, #tpu.memory_space<vmem>>, vector<256x8xf32>
    tpu.vector_store %arg9[%c0_21, %c0_22], %35 {strides = array<i32>} : memref<256x8xf32, #tpu.memory_space<vmem>>, vector<256x8xf32>,
    %37 = vector.broadcast %23 : vector<256x1xf32> to vector<256x8xf32>
    %38 = arith.mulf %37, %33 : vector<256x8xf32>
    %c0_23 = arith.constant 0 : index
    %c0_24 = arith.constant 0 : index
    %39 = vector.load %arg10[%c0_23, %c0_24] : memref<256x8xf32, #tpu.memory_space<vmem>>, vector<256x8xf32>
    tpu.vector_store %arg10[%c0_23, %c0_24], %38 {strides = array<i32>} : memref<256x8xf32, #tpu.memory_space<vmem>>, vector<256x8xf32>,
    return
  }
  func.func @transform_0(%arg0: i32) -> (i32, i32) {
    %c0_i32 = arith.constant 0 : i32
    %c0_i32_0 = arith.constant 0 : i32
    return %arg0, %c0_i32 : i32, i32
  }
  func.func @transform_1(%arg0: i32) -> (i32, i32) {
    %c0_i32 = arith.constant 0 : i32
    %c0_i32_0 = arith.constant 0 : i32
    return %arg0, %c0_i32 : i32, i32
  }
  func.func @transform_2(%arg0: i32) -> (i32, i32) {
    %c0_i32 = arith.constant 0 : i32
    %c0_i32_0 = arith.constant 0 : i32
    %c0_i32_1 = arith.constant 0 : i32
    return %c0_i32, %c0_i32_0 : i32, i32
  }
  func.func @transform_3(%arg0: i32) -> (i32, i32) {
    %c0_i32 = arith.constant 0 : i32
    %c0_i32_0 = arith.constant 0 : i32
    %c0_i32_1 = arith.constant 0 : i32
    return %c0_i32, %c0_i32_0 : i32, i32
  }
  func.func @transform_4(%arg0: i32) -> (i32, i32) {
    %c0_i32 = arith.constant 0 : i32
    %c0_i32_0 = arith.constant 0 : i32
    %c0_i32_1 = arith.constant 0 : i32
    return %c0_i32, %c0_i32_0 : i32, i32
  }
  func.func @transform_5(%arg0: i32) -> (i32, i32) {
    %c0_i32 = arith.constant 0 : i32
    %c0_i32_0 = arith.constant 0 : i32
    %c0_i32_1 = arith.constant 0 : i32
    return %c0_i32, %c0_i32_0 : i32, i32
  }
  func.func @transform_6(%arg0: i32) -> (i32, i32) {
    %c0_i32 = arith.constant 0 : i32
    %c0_i32_0 = arith.constant 0 : i32
    %c0_i32_1 = arith.constant 0 : i32
    return %c0_i32, %c0_i32_0 : i32, i32
  }
  func.func @transform_7(%arg0: i32) -> (i32, i32) {
    %c0_i32 = arith.constant 0 : i32
    %c0_i32_0 = arith.constant 0 : i32
    %c0_i32_1 = arith.constant 0 : i32
    return %c0_i32, %c0_i32_0 : i32, i32
  }
  func.func @transform_8(%arg0: i32) -> (i32, i32) {
    %c0_i32 = arith.constant 0 : i32
    %c0_i32_0 = arith.constant 0 : i32
    return %arg0, %c0_i32 : i32, i32
  }
  func.func @transform_9(%arg0: i32) -> (i32, i32) {
    %c0_i32 = arith.constant 0 : i32
    %c0_i32_0 = arith.constant 0 : i32
    return %arg0, %c0_i32 : i32, i32
  }
}

</mosaic_0001>

<llo_original>
// kernel: tpu_custom_call.1
$region0: #{tpu_custom_call.1}
  #allocation0 [shape = 'u32[]', space=smem, size = 0x4, offset = 0x4, fixed_abs, tag = 'smem constant byte address 0x4 - core index']
  #allocation1 [shape = 'u32[144,128]{1,0:T(1,128)}', space=vmem, size = 0x12000, scoped, tag = 'internal scratch']
  %s0 = inlined_call_operand.vmem [shape: f32[256,32], index: 0, kind: input, shape index: {}]
  %s1 = inlined_call_operand.vmem [shape: f32[256,1], index: 1, kind: input, shape index: {}]
  %s2 = inlined_call_operand.vmem [shape: f32[1,32], index: 2, kind: input, shape index: {}]
  %s3 = inlined_call_operand.vmem [shape: f32[1,32], index: 3, kind: input, shape index: {}]
  %s4 = inlined_call_operand.vmem [shape: f32[32,8], index: 4, kind: input, shape index: {}]
  %s5 = inlined_call_operand.vmem [shape: f32[1,8], index: 5, kind: input, shape index: {}]
  %s6 = inlined_call_operand.vmem [shape: f32[32,8], index: 6, kind: input, shape index: {}]
  %s7 = inlined_call_operand.vmem [shape: f32[1,8], index: 7, kind: input, shape index: {}]
  %s8 = inlined_call_operand.vmem [shape: f32[256,8], index: 8, kind: output, shape index: {0}]
  %s9 = inlined_call_operand.vmem [shape: f32[256,8], index: 9, kind: output, shape index: {1}]
  %10 = xla_tuple %s8, %s9
  %s11 = sld [smem:[#allocation0]]
  $region50: #{tpu_custom_call.1} parent=0
    _
  %s13 = ssub.s32 1, %s11
  %s14 = scalar_select 0, %s13, %s11
  // Predicated region
  $region2: #{tpu_custom_call.1} parent=0 // pred_check
    _
  $region3: #{tpu_custom_call.1} parent=0 // pred_check_branch
    %16 = sbr.rel (0) target = $region5
  $region4: #{tpu_custom_call.1} parent=0 // pred_region
    _
  $region5: #{tpu_custom_call.1} parent=0 // pred_fallthru
    _
  // Predicated region
  $region6: #{tpu_custom_call.1} parent=0 // pred_check
    _
  $region7: #{tpu_custom_call.1} parent=0 // pred_check_branch
    %18 = sbr.rel (0) target = $region9
  $region8: #{tpu_custom_call.1} parent=0 // pred_region
    _
  $region9: #{tpu_custom_call.1} parent=0 // pred_fallthru
    _
  // Predicated region
  $region10: #{tpu_custom_call.1} parent=0 // pred_check
    _
  $region11: #{tpu_custom_call.1} parent=0 // pred_check_branch
    %20 = sbr.rel (0) target = $region13
  $region12: #{tpu_custom_call.1} parent=0 // pred_region
    _
  $region13: #{tpu_custom_call.1} parent=0 // pred_fallthru
    _
  // Predicated region
  $region14: #{tpu_custom_call.1} parent=0 // pred_check
    _
  $region15: #{tpu_custom_call.1} parent=0 // pred_check_branch
    %22 = sbr.rel (0) target = $region17
  $region16: #{tpu_custom_call.1} parent=0 // pred_region
    _
  $region17: #{tpu_custom_call.1} parent=0 // pred_fallthru
    _
  // Predicated region
  $region18: #{tpu_custom_call.1} parent=0 // pred_check
    _
  $region19: #{tpu_custom_call.1} parent=0 // pred_check_branch
    %24 = sbr.rel (0) target = $region21
  $region20: #{tpu_custom_call.1} parent=0 // pred_region
    _
  $region21: #{tpu_custom_call.1} parent=0 // pred_fallthru
    _
  // Predicated region
  $region22: #{tpu_custom_call.1} parent=0 // pred_check
    _
  $region23: #{tpu_custom_call.1} parent=0 // pred_check_branch
    %26 = sbr.rel (0) target = $region25
  $region24: #{tpu_custom_call.1} parent=0 // pred_region
    _
  $region25: #{tpu_custom_call.1} parent=0 // pred_fallthru
    _
  // Predicated region
  $region26: #{tpu_custom_call.1} parent=0 // pred_check
    _
  $region27: #{tpu_custom_call.1} parent=0 // pred_check_branch
    %28 = sbr.rel (0) target = $region29
  $region28: #{tpu_custom_call.1} parent=0 // pred_region
    _
  $region29: #{tpu_custom_call.1} parent=0 // pred_fallthru
    _
  // Predicated region
  $region30: #{tpu_custom_call.1} parent=0 // pred_check
    _
  $region31: #{tpu_custom_call.1} parent=0 // pred_check_branch
    %30 = sbr.rel (0) target = $region33
  $region32: #{tpu_custom_call.1} parent=0 // pred_region
    _
  $region33: #{tpu_custom_call.1} parent=0 // pred_fallthru
    _
  %v31 = vld [vmem:[%s0] sm:$0xff]
  %v32 = vld [vmem:[%s0 + $0x8] sm:$0xff]
  %v33 = vld [vmem:[%s0 + $0x10] sm:$0xff]
  %v34 = vld [vmem:[%s0 + $0x18] sm:$0xff]
  %v35 = vld [vmem:[%s0 + $0x20] sm:$0xff]
  %v36 = vld [vmem:[%s0 + $0x28] sm:$0xff]
  %v37 = vld [vmem:[%s0 + $0x30] sm:$0xff]
  %v38 = vld [vmem:[%s0 + $0x38] sm:$0xff]
  %v39 = vld [vmem:[%s0 + $0x40] sm:$0xff]
  %v40 = vld [vmem:[%s0 + $0x48] sm:$0xff]
  %v41 = vld [vmem:[%s0 + $0x50] sm:$0xff]
  %v42 = vld [vmem:[%s0 + $0x58] sm:$0xff]
  %v43 = vld [vmem:[%s0 + $0x60] sm:$0xff]
  %v44 = vld [vmem:[%s0 + $0x68] sm:$0xff]
  %v45 = vld [vmem:[%s0 + $0x70] sm:$0xff]
  %v46 = vld [vmem:[%s0 + $0x78] sm:$0xff]
  %v47 = vld [vmem:[%s0 + $0x80] sm:$0xff]
  %v48 = vld [vmem:[%s0 + $0x88] sm:$0xff]
  %v49 = vld [vmem:[%s0 + $0x90] sm:$0xff]
  %v50 = vld [vmem:[%s0 + $0x98] sm:$0xff]
  %v51 = vld [vmem:[%s0 + $0xa0] sm:$0xff]
  %v52 = vld [vmem:[%s0 + $0xa8] sm:$0xff]
  %v53 = vld [vmem:[%s0 + $0xb0] sm:$0xff]
  %v54 = vld [vmem:[%s0 + $0xb8] sm:$0xff]
  %v55 = vld [vmem:[%s0 + $0xc0] sm:$0xff]
  %v56 = vld [vmem:[%s0 + $0xc8] sm:$0xff]
  %v57 = vld [vmem:[%s0 + $0xd0] sm:$0xff]
  %v58 = vld [vmem:[%s0 + $0xd8] sm:$0xff]
  %v59 = vld [vmem:[%s0 + $0xe0] sm:$0xff]
  %v60 = vld [vmem:[%s0 + $0xe8] sm:$0xff]
  %v61 = vld [vmem:[%s0 + $0xf0] sm:$0xff]
  %v62 = vld [vmem:[%s0 + $0xf8] sm:$0xff]
  %vm63 = vcmask 261120
  %v64 = vsel %vm63, %v31, 0.0
  %65 = vadd.xlane.f32.xlu0 %v64
  %v66 = vpop.xlane.xlu0 %65
  %v67 = vsel %vm63, %v32, 0.0
  %68 = vadd.xlane.f32.xlu0 %v67
  %v69 = vpop.xlane.xlu0 %68
  %v70 = vsel %vm63, %v33, 0.0
  %71 = vadd.xlane.f32.xlu0 %v70
  %v72 = vpop.xlane.xlu0 %71
  %v73 = vsel %vm63, %v34, 0.0
  %74 = vadd.xlane.f32.xlu0 %v73
  %v75 = vpop.xlane.xlu0 %74
  %v76 = vsel %vm63, %v35, 0.0
  %77 = vadd.xlane.f32.xlu0 %v76
  %v78 = vpop.xlane.xlu0 %77
  %v79 = vsel %vm63, %v36, 0.0
  %80 = vadd.xlane.f32.xlu0 %v79
  %v81 = vpop.xlane.xlu0 %80
  %v82 = vsel %vm63, %v37, 0.0
  %83 = vadd.xlane.f32.xlu0 %v82
  %v84 = vpop.xlane.xlu0 %83
  %v85 = vsel %vm63, %v38, 0.0
  %86 = vadd.xlane.f32.xlu0 %v85
  %v87 = vpop.xlane.xlu0 %86
  %v88 = vsel %vm63, %v39, 0.0
  %89 = vadd.xlane.f32.xlu0 %v88
  %v90 = vpop.xlane.xlu0 %89
  %v91 = vsel %vm63, %v40, 0.0
  %92 = vadd.xlane.f32.xlu0 %v91
  %v93 = vpop.xlane.xlu0 %92
  %v94 = vsel %vm63, %v41, 0.0
  %95 = vadd.xlane.f32.xlu0 %v94
  %v96 = vpop.xlane.xlu0 %95
  %v97 = vsel %vm63, %v42, 0.0
  %98 = vadd.xlane.f32.xlu0 %v97
  %v99 = vpop.xlane.xlu0 %98
  %v100 = vsel %vm63, %v43, 0.0
  %101 = vadd.xlane.f32.xlu0 %v100
  %v102 = vpop.xlane.xlu0 %101
  %v103 = vsel %vm63, %v44, 0.0
  %104 = vadd.xlane.f32.xlu0 %v103
  %v105 = vpop.xlane.xlu0 %104
  %v106 = vsel %vm63, %v45, 0.0
  %107 = vadd.xlane.f32.xlu0 %v106
  %v108 = vpop.xlane.xlu0 %107
  %v109 = vsel %vm63, %v46, 0.0
  %110 = vadd.xlane.f32.xlu0 %v109
  %v111 = vpop.xlane.xlu0 %110
  %v112 = vsel %vm63, %v47, 0.0
  %113 = vadd.xlane.f32.xlu0 %v112
  %v114 = vpop.xlane.xlu0 %113
  %v115 = vsel %vm63, %v48, 0.0
  %116 = vadd.xlane.f32.xlu0 %v115
  %v117 = vpop.xlane.xlu0 %116
  %v118 = vsel %vm63, %v49, 0.0
  %119 = vadd.xlane.f32.xlu0 %v118
  %v120 = vpop.xlane.xlu0 %119
  %v121 = vsel %vm63, %v50, 0.0
  %122 = vadd.xlane.f32.xlu0 %v121
  %v123 = vpop.xlane.xlu0 %122
  %v124 = vsel %vm63, %v51, 0.0
  %125 = vadd.xlane.f32.xlu0 %v124
  %v126 = vpop.xlane.xlu0 %125
  %v127 = vsel %vm63, %v52, 0.0
  %128 = vadd.xlane.f32.xlu0 %v127
  %v129 = vpop.xlane.xlu0 %128
  %v130 = vsel %vm63, %v53, 0.0
  %131 = vadd.xlane.f32.xlu0 %v130
  %v132 = vpop.xlane.xlu0 %131
  %v133 = vsel %vm63, %v54, 0.0
  %134 = vadd.xlane.f32.xlu0 %v133
  %v135 = vpop.xlane.xlu0 %134
  %v136 = vsel %vm63, %v55, 0.0
  %137 = vadd.xlane.f32.xlu0 %v136
  %v138 = vpop.xlane.xlu0 %137
  %v139 = vsel %vm63, %v56, 0.0
  %140 = vadd.xlane.f32.xlu0 %v139
  %v141 = vpop.xlane.xlu0 %140
  %v142 = vsel %vm63, %v57, 0.0
  %143 = vadd.xlane.f32.xlu0 %v142
  %v144 = vpop.xlane.xlu0 %143
  %v145 = vsel %vm63, %v58, 0.0
  %146 = vadd.xlane.f32.xlu0 %v145
  %v147 = vpop.xlane.xlu0 %146
  %v148 = vsel %vm63, %v59, 0.0
  %149 = vadd.xlane.f32.xlu0 %v148
  %v150 = vpop.xlane.xlu0 %149
  %v151 = vsel %vm63, %v60, 0.0
  %152 = vadd.xlane.f32.xlu0 %v151
  %v153 = vpop.xlane.xlu0 %152
  %v154 = vsel %vm63, %v61, 0.0
  %155 = vadd.xlane.f32.xlu0 %v154
  %v156 = vpop.xlane.xlu0 %155
  %v157 = vsel %vm63, %v62, 0.0
  %158 = vadd.xlane.f32.xlu0 %v157
  %v159 = vpop.xlane.xlu0 %158
  %v160 = vrcp.pop 32.0
  %v161 = vmul.f32 %v66, %v160
  %v162 = vmul.f32 %v69, %v160
  %v163 = vmul.f32 %v72, %v160
  %v164 = vmul.f32 %v75, %v160
  %v165 = vmul.f32 %v78, %v160
  %v166 = vmul.f32 %v81, %v160
  %v167 = vmul.f32 %v84, %v160
  %v168 = vmul.f32 %v87, %v160
  %v169 = vmul.f32 %v90, %v160
  %v170 = vmul.f32 %v93, %v160
  %v171 = vmul.f32 %v96, %v160
  %v172 = vmul.f32 %v99, %v160
  %v173 = vmul.f32 %v102, %v160
  %v174 = vmul.f32 %v105, %v160
  %v175 = vmul.f32 %v108, %v160
  %v176 = vmul.f32 %v111, %v160
  %v177 = vmul.f32 %v114, %v160
  %v178 = vmul.f32 %v117, %v160
  %v179 = vmul.f32 %v120, %v160
  %v180 = vmul.f32 %v123, %v160
  %v181 = vmul.f32 %v126, %v160
  %v182 = vmul.f32 %v129, %v160
  %v183 = vmul.f32 %v132, %v160
  %v184 = vmul.f32 %v135, %v160
  %v185 = vmul.f32 %v138, %v160
  %v186 = vmul.f32 %v141, %v160
  %v187 = vmul.f32 %v144, %v160
  %v188 = vmul.f32 %v147, %v160
  %v189 = vmul.f32 %v150, %v160
  %v190 = vmul.f32 %v153, %v160
  %v191 = vmul.f32 %v156, %v160
  %v192 = vmul.f32 %v159, %v160
  %v193 = vsub.f32 %v31, %v161
  %v194 = vsub.f32 %v32, %v162
  %v195 = vsub.f32 %v33, %v163
  %v196 = vsub.f32 %v34, %v164
  %v197 = vsub.f32 %v35, %v165
  %v198 = vsub.f32 %v36, %v166
  %v199 = vsub.f32 %v37, %v167
  %v200 = vsub.f32 %v38, %v168
  %v201 = vsub.f32 %v39, %v169
  %v202 = vsub.f32 %v40, %v170
  %v203 = vsub.f32 %v41, %v171
  %v204 = vsub.f32 %v42, %v172
  %v205 = vsub.f32 %v43, %v173
  %v206 = vsub.f32 %v44, %v174
  %v207 = vsub.f32 %v45, %v175
  %v208 = vsub.f32 %v46, %v176
  %v209 = vsub.f32 %v47, %v177
  %v210 = vsub.f32 %v48, %v178
  %v211 = vsub.f32 %v49, %v179
  %v212 = vsub.f32 %v50, %v180
  %v213 = vsub.f32 %v51, %v181
  %v214 = vsub.f32 %v52, %v182
  %v215 = vsub.f32 %v53, %v183
  %v216 = vsub.f32 %v54, %v184
  %v217 = vsub.f32 %v55, %v185
  %v218 = vsub.f32 %v56, %v186
  %v219 = vsub.f32 %v57, %v187
  %v220 = vsub.f32 %v58, %v188
  %v221 = vsub.f32 %v59, %v189
  %v222 = vsub.f32 %v60, %v190
  %v223 = vsub.f32 %v61, %v191
  %v224 = vsub.f32 %v62, %v192
  %v225 = vmul.f32 %v193, %v193
  %v226 = vmul.f32 %v194, %v194
  %v227 = vmul.f32 %v195, %v195
  %v228 = vmul.f32 %v196, %v196
  %v229 = vmul.f32 %v197, %v197
  %v230 = vmul.f32 %v198, %v198
  %v231 = vmul.f32 %v199, %v199
  %v232 = vmul.f32 %v200, %v200
  %v233 = vmul.f32 %v201, %v201
  %v234 = vmul.f32 %v202, %v202
  %v235 = vmul.f32 %v203, %v203
  %v236 = vmul.f32 %v204, %v204
  %v237 = vmul.f32 %v205, %v205
  %v238 = vmul.f32 %v206, %v206
  %v239 = vmul.f32 %v207, %v207
  %v240 = vmul.f32 %v208, %v208
  %v241 = vmul.f32 %v209, %v209
  %v242 = vmul.f32 %v210, %v210
  %v243 = vmul.f32 %v211, %v211
  %v244 = vmul.f32 %v212, %v212
  %v245 = vmul.f32 %v213, %v213
  %v246 = vmul.f32 %v214, %v214
  %v247 = vmul.f32 %v215, %v215
  %v248 = vmul.f32 %v216, %v216
  %v249 = vmul.f32 %v217, %v217
  %v250 = vmul.f32 %v218, %v218
  %v251 = vmul.f32 %v219, %v219
  %v252 = vmul.f32 %v220, %v220
  %v253 = vmul.f32 %v221, %v221
  %v254 = vmul.f32 %v222, %v222
  %v255 = vmul.f32 %v223, %v223
  %v256 = vmul.f32 %v224, %v224
  %v257 = vsel %vm63, %v225, 0.0
  %258 = vadd.xlane.f32.xlu0 %v257
  %v259 = vpop.xlane.xlu0 %258
  %v260 = vsel %vm63, %v226, 0.0
  %261 = vadd.xlane.f32.xlu0 %v260
  %v262 = vpop.xlane.xlu0 %261
  %v263 = vsel %vm63, %v227, 0.0
  %264 = vadd.xlane.f32.xlu0 %v263
  %v265 = vpop.xlane.xlu0 %264
  %v266 = vsel %vm63, %v228, 0.0
  %267 = vadd.xlane.f32.xlu0 %v266
  %v268 = vpop.xlane.xlu0 %267
  %v269 = vsel %vm63, %v229, 0.0
  %270 = vadd.xlane.f32.xlu0 %v269
  %v271 = vpop.xlane.xlu0 %270
  %v272 = vsel %vm63, %v230, 0.0
  %273 = vadd.xlane.f32.xlu0 %v272
  %v274 = vpop.xlane.xlu0 %273
  %v275 = vsel %vm63, %v231, 0.0
  %276 = vadd.xlane.f32.xlu0 %v275
  %v277 = vpop.xlane.xlu0 %276
  %v278 = vsel %vm63, %v232, 0.0
  %279 = vadd.xlane.f32.xlu0 %v278
  %v280 = vpop.xlane.xlu0 %279
  %v281 = vsel %vm63, %v233, 0.0
  %282 = vadd.xlane.f32.xlu0 %v281
  %v283 = vpop.xlane.xlu0 %282
  %v284 = vsel %vm63, %v234, 0.0
  %285 = vadd.xlane.f32.xlu0 %v284
  %v286 = vpop.xlane.xlu0 %285
  %v287 = vsel %vm63, %v235, 0.0
  %288 = vadd.xlane.f32.xlu0 %v287
  %v289 = vpop.xlane.xlu0 %288
  %v290 = vsel %vm63, %v236, 0.0
  %291 = vadd.xlane.f32.xlu0 %v290
  %v292 = vpop.xlane.xlu0 %291
  %v293 = vsel %vm63, %v237, 0.0
  %294 = vadd.xlane.f32.xlu0 %v293
  %v295 = vpop.xlane.xlu0 %294
  %v296 = vsel %vm63, %v238, 0.0
  %297 = vadd.xlane.f32.xlu0 %v296
  %v298 = vpop.xlane.xlu0 %297
  %v299 = vsel %vm63, %v239, 0.0
  %300 = vadd.xlane.f32.xlu0 %v299
  %v301 = vpop.xlane.xlu0 %300
  %v302 = vsel %vm63, %v240, 0.0
  %303 = vadd.xlane.f32.xlu0 %v302
  %v304 = vpop.xlane.xlu0 %303
  %v305 = vsel %vm63, %v241, 0.0
  %306 = vadd.xlane.f32.xlu0 %v305
  %v307 = vpop.xlane.xlu0 %306
  %v308 = vsel %vm63, %v242, 0.0
  %309 = vadd.xlane.f32.xlu0 %v308
  %v310 = vpop.xlane.xlu0 %309
  %v311 = vsel %vm63, %v243, 0.0
  %312 = vadd.xlane.f32.xlu0 %v311
  %v313 = vpop.xlane.xlu0 %312
  %v314 = vsel %vm63, %v244, 0.0
  %315 = vadd.xlane.f32.xlu0 %v314
  %v316 = vpop.xlane.xlu0 %315
  %v317 = vsel %vm63, %v245, 0.0
  %318 = vadd.xlane.f32.xlu0 %v317
  %v319 = vpop.xlane.xlu0 %318
  %v320 = vsel %vm63, %v246, 0.0
  %321 = vadd.xlane.f32.xlu0 %v320
  %v322 = vpop.xlane.xlu0 %321
  %v323 = vsel %vm63, %v247, 0.0
  %324 = vadd.xlane.f32.xlu0 %v323
  %v325 = vpop.xlane.xlu0 %324
  %v326 = vsel %vm63, %v248, 0.0
  %327 = vadd.xlane.f32.xlu0 %v326
  %v328 = vpop.xlane.xlu0 %327
  %v329 = vsel %vm63, %v249, 0.0
  %330 = vadd.xlane.f32.xlu0 %v329
  %v331 = vpop.xlane.xlu0 %330
  %v332 = vsel %vm63, %v250, 0.0
  %333 = vadd.xlane.f32.xlu0 %v332
  %v334 = vpop.xlane.xlu0 %333
  %v335 = vsel %vm63, %v251, 0.0
  %336 = vadd.xlane.f32.xlu0 %v335
  %v337 = vpop.xlane.xlu0 %336
  %v338 = vsel %vm63, %v252, 0.0
  %339 = vadd.xlane.f32.xlu0 %v338
  %v340 = vpop.xlane.xlu0 %339
  %v341 = vsel %vm63, %v253, 0.0
  %342 = vadd.xlane.f32.xlu0 %v341
  %v343 = vpop.xlane.xlu0 %342
  %v344 = vsel %vm63, %v254, 0.0
  %345 = vadd.xlane.f32.xlu0 %v344
  %v346 = vpop.xlane.xlu0 %345
  %v347 = vsel %vm63, %v255, 0.0
  %348 = vadd.xlane.f32.xlu0 %v347
  %v349 = vpop.xlane.xlu0 %348
  %v350 = vsel %vm63, %v256, 0.0
  %351 = vadd.xlane.f32.xlu0 %v350
  %v352 = vpop.xlane.xlu0 %351
  %v353 = vmul.f32 %v259, %v160
  %v354 = vmul.f32 %v262, %v160
  %v355 = vmul.f32 %v265, %v160
  %v356 = vmul.f32 %v268, %v160
  %v357 = vmul.f32 %v271, %v160
  %v358 = vmul.f32 %v274, %v160
  %v359 = vmul.f32 %v277, %v160
  %v360 = vmul.f32 %v280, %v160
  %v361 = vmul.f32 %v283, %v160
  %v362 = vmul.f32 %v286, %v160
  %v363 = vmul.f32 %v289, %v160
  %v364 = vmul.f32 %v292, %v160
  %v365 = vmul.f32 %v295, %v160
  %v366 = vmul.f32 %v298, %v160
  %v367 = vmul.f32 %v301, %v160
  %v368 = vmul.f32 %v304, %v160
  %v369 = vmul.f32 %v307, %v160
  %v370 = vmul.f32 %v310, %v160
  %v371 = vmul.f32 %v313, %v160
  %v372 = vmul.f32 %v316, %v160
  %v373 = vmul.f32 %v319, %v160
  %v374 = vmul.f32 %v322, %v160
  %v375 = vmul.f32 %v325, %v160
  %v376 = vmul.f32 %v328, %v160
  %v377 = vmul.f32 %v331, %v160
  %v378 = vmul.f32 %v334, %v160
  %v379 = vmul.f32 %v337, %v160
  %v380 = vmul.f32 %v340, %v160
  %v381 = vmul.f32 %v343, %v160
  %v382 = vmul.f32 %v346, %v160
  %v383 = vmul.f32 %v349, %v160
  %v384 = vmul.f32 %v352, %v160
  %v385 = vadd.f32 %v353, 1e-05
  %v386 = vadd.f32 %v354, 1e-05
  %v387 = vadd.f32 %v355, 1e-05
  %v388 = vadd.f32 %v356, 1e-05
  %v389 = vadd.f32 %v357, 1e-05
  %v390 = vadd.f32 %v358, 1e-05
  %v391 = vadd.f32 %v359, 1e-05
  %v392 = vadd.f32 %v360, 1e-05
  %v393 = vadd.f32 %v361, 1e-05
  %v394 = vadd.f32 %v362, 1e-05
  %v395 = vadd.f32 %v363, 1e-05
  %v396 = vadd.f32 %v364, 1e-05
  %v397 = vadd.f32 %v365, 1e-05
  %v398 = vadd.f32 %v366, 1e-05
  %v399 = vadd.f32 %v367, 1e-05
  %v400 = vadd.f32 %v368, 1e-05
  %v401 = vadd.f32 %v369, 1e-05
  %v402 = vadd.f32 %v370, 1e-05
  %v403 = vadd.f32 %v371, 1e-05
  %v404 = vadd.f32 %v372, 1e-05
  %v405 = vadd.f32 %v373, 1e-05
  %v406 = vadd.f32 %v374, 1e-05
  %v407 = vadd.f32 %v375, 1e-05
  %v408 = vadd.f32 %v376, 1e-05
  %v409 = vadd.f32 %v377, 1e-05
  %v410 = vadd.f32 %v378, 1e-05
  %v411 = vadd.f32 %v379, 1e-05
  %v412 = vadd.f32 %v380, 1e-05
  %v413 = vadd.f32 %v381, 1e-05
  %v414 = vadd.f32 %v382, 1e-05
  %v415 = vadd.f32 %v383, 1e-05
  %v416 = vadd.f32 %v384, 1e-05
  %v417 = vrsqrt.pop %v385
  %v418 = vrsqrt.pop %v386
  %v419 = vrsqrt.pop %v387
  %v420 = vrsqrt.pop %v388
  %v421 = vrsqrt.pop %v389
  %v422 = vrsqrt.pop %v390
  %v423 = vrsqrt.pop %v391
  %v424 = vrsqrt.pop %v392
  %v425 = vrsqrt.pop %v393
  %v426 = vrsqrt.pop %v394
  %v427 = vrsqrt.pop %v395
  %v428 = vrsqrt.pop %v396
  %v429 = vrsqrt.pop %v397
  %v430 = vrsqrt.pop %v398
  %v431 = vrsqrt.pop %v399
  %v432 = vrsqrt.pop %v400
  %v433 = vrsqrt.pop %v401
  %v434 = vrsqrt.pop %v402
  %v435 = vrsqrt.pop %v403
  %v436 = vrsqrt.pop %v404
  %v437 = vrsqrt.pop %v405
  %v438 = vrsqrt.pop %v406
  %v439 = vrsqrt.pop %v407
  %v440 = vrsqrt.pop %v408
  %v441 = vrsqrt.pop %v409
  %v442 = vrsqrt.pop %v410
  %v443 = vrsqrt.pop %v411
  %v444 = vrsqrt.pop %v412
  %v445 = vrsqrt.pop %v413
  %v446 = vrsqrt.pop %v414
  %v447 = vrsqrt.pop %v415
  %v448 = vrsqrt.pop %v416
  %v449 = vmul.f32 %v193, %v417
  %v450 = vmul.f32 %v194, %v418
  %v451 = vmul.f32 %v195, %v419
  %v452 = vmul.f32 %v196, %v420
  %v453 = vmul.f32 %v197, %v421
  %v454 = vmul.f32 %v198, %v422
  %v455 = vmul.f32 %v199, %v423
  %v456 = vmul.f32 %v200, %v424
  %v457 = vmul.f32 %v201, %v425
  %v458 = vmul.f32 %v202, %v426
  %v459 = vmul.f32 %v203, %v427
  %v460 = vmul.f32 %v204, %v428
  %v461 = vmul.f32 %v205, %v429
  %v462 = vmul.f32 %v206, %v430
  %v463 = vmul.f32 %v207, %v431
  %v464 = vmul.f32 %v208, %v432
  %v465 = vmul.f32 %v209, %v433
  %v466 = vmul.f32 %v210, %v434
  %v467 = vmul.f32 %v211, %v435
  %v468 = vmul.f32 %v212, %v436
  %v469 = vmul.f32 %v213, %v437
  %v470 = vmul.f32 %v214, %v438
  %v471 = vmul.f32 %v215, %v439
  %v472 = vmul.f32 %v216, %v440
  %v473 = vmul.f32 %v217, %v441
  %v474 = vmul.f32 %v218, %v442
  %v475 = vmul.f32 %v219, %v443
  %v476 = vmul.f32 %v220, %v444
  %v477 = vmul.f32 %v221, %v445
  %v478 = vmul.f32 %v222, %v446
  %v479 = vmul.f32 %v223, %v447
  %v480 = vmul.f32 %v224, %v448
  %v481 = vld [vmem:[%s2] sm:$0x1]
  %v483 = vlaneseq
  %v484 = vshrl.u32 %v483, 7
  %v485 = vsub.s32 0, %v484
  %v486 = vrot.slane %v481, %v485
  %v488 = vmul.f32 %v449, %v486
  %v489 = vmul.f32 %v450, %v486
  %v490 = vmul.f32 %v451, %v486
  %v491 = vmul.f32 %v452, %v486
  %v492 = vmul.f32 %v453, %v486
  %v493 = vmul.f32 %v454, %v486
  %v494 = vmul.f32 %v455, %v486
  %v495 = vmul.f32 %v456, %v486
  %v496 = vmul.f32 %v457, %v486
  %v497 = vmul.f32 %v458, %v486
  %v498 = vmul.f32 %v459, %v486
  %v499 = vmul.f32 %v460, %v486
  %v500 = vmul.f32 %v461, %v486
  %v501 = vmul.f32 %v462, %v486
  %v502 = vmul.f32 %v463, %v486
  %v503 = vmul.f32 %v464, %v486
  %v504 = vmul.f32 %v465, %v486
  %v505 = vmul.f32 %v466, %v486
  %v506 = vmul.f32 %v467, %v486
  %v507 = vmul.f32 %v468, %v486
  %v508 = vmul.f32 %v469, %v486
  %v509 = vmul.f32 %v470, %v486
  %v510 = vmul.f32 %v471, %v486
  %v511 = vmul.f32 %v472, %v486
  %v512 = vmul.f32 %v473, %v486
  %v513 = vmul.f32 %v474, %v486
  %v514 = vmul.f32 %v475, %v486
  %v515 = vmul.f32 %v476, %v486
  %v516 = vmul.f32 %v477, %v486
  %v517 = vmul.f32 %v478, %v486
  %v518 = vmul.f32 %v479, %v486
  %v519 = vmul.f32 %v480, %v486
  %v520 = vld [vmem:[%s3] sm:$0x1]
  %v522 = vlaneseq
  %v523 = vshrl.u32 %v522, 7
  %v524 = vsub.s32 0, %v523
  %v525 = vrot.slane %v520, %v524
  %v527 = vadd.f32 %v488, %v525
  %v528 = vadd.f32 %v489, %v525
  %v529 = vadd.f32 %v490, %v525
  %v530 = vadd.f32 %v491, %v525
  %v531 = vadd.f32 %v492, %v525
  %v532 = vadd.f32 %v493, %v525
  %v533 = vadd.f32 %v494, %v525
  %v534 = vadd.f32 %v495, %v525
  %v535 = vadd.f32 %v496, %v525
  %v536 = vadd.f32 %v497, %v525
  %v537 = vadd.f32 %v498, %v525
  %v538 = vadd.f32 %v499, %v525
  %v539 = vadd.f32 %v500, %v525
  %v540 = vadd.f32 %v501, %v525
  %v541 = vadd.f32 %v502, %v525
  %v542 = vadd.f32 %v503, %v525
  %v543 = vadd.f32 %v504, %v525
  %v544 = vadd.f32 %v505, %v525
  %v545 = vadd.f32 %v506, %v525
  %v546 = vadd.f32 %v507, %v525
  %v547 = vadd.f32 %v508, %v525
  %v548 = vadd.f32 %v509, %v525
  %v549 = vadd.f32 %v510, %v525
  %v550 = vadd.f32 %v511, %v525
  %v551 = vadd.f32 %v512, %v525
  %v552 = vadd.f32 %v513, %v525
  %v553 = vadd.f32 %v514, %v525
  %v554 = vadd.f32 %v515, %v525
  %v555 = vadd.f32 %v516, %v525
  %v556 = vadd.f32 %v517, %v525
  %v557 = vadd.f32 %v518, %v525
  %v558 = vadd.f32 %v519, %v525
  %v559 = vld [vmem:[%s1] sm:$0xff]
  %v560 = vld [vmem:[%s1 + $0x8] sm:$0xff]
  %v561 = vld [vmem:[%s1 + $0x10] sm:$0xff]
  %v562 = vld [vmem:[%s1 + $0x18] sm:$0xff]
  %v563 = vld [vmem:[%s1 + $0x20] sm:$0xff]
  %v564 = vld [vmem:[%s1 + $0x28] sm:$0xff]
  %v565 = vld [vmem:[%s1 + $0x30] sm:$0xff]
  %v566 = vld [vmem:[%s1 + $0x38] sm:$0xff]
  %v567 = vld [vmem:[%s1 + $0x40] sm:$0xff]
  %v568 = vld [vmem:[%s1 + $0x48] sm:$0xff]
  %v569 = vld [vmem:[%s1 + $0x50] sm:$0xff]
  %v570 = vld [vmem:[%s1 + $0x58] sm:$0xff]
  %v571 = vld [vmem:[%s1 + $0x60] sm:$0xff]
  %v572 = vld [vmem:[%s1 + $0x68] sm:$0xff]
  %v573 = vld [vmem:[%s1 + $0x70] sm:$0xff]
  %v574 = vld [vmem:[%s1 + $0x78] sm:$0xff]
  %v575 = vld [vmem:[%s1 + $0x80] sm:$0xff]
  %v576 = vld [vmem:[%s1 + $0x88] sm:$0xff]
  %v577 = vld [vmem:[%s1 + $0x90] sm:$0xff]
  %v578 = vld [vmem:[%s1 + $0x98] sm:$0xff]
  %v579 = vld [vmem:[%s1 + $0xa0] sm:$0xff]
  %v580 = vld [vmem:[%s1 + $0xa8] sm:$0xff]
  %v581 = vld [vmem:[%s1 + $0xb0] sm:$0xff]
  %v582 = vld [vmem:[%s1 + $0xb8] sm:$0xff]
  %v583 = vld [vmem:[%s1 + $0xc0] sm:$0xff]
  %v584 = vld [vmem:[%s1 + $0xc8] sm:$0xff]
  %v585 = vld [vmem:[%s1 + $0xd0] sm:$0xff]
  %v586 = vld [vmem:[%s1 + $0xd8] sm:$0xff]
  %v587 = vld [vmem:[%s1 + $0xe0] sm:$0xff]
  %v588 = vld [vmem:[%s1 + $0xe8] sm:$0xff]
  %v589 = vld [vmem:[%s1 + $0xf0] sm:$0xff]
  %v590 = vld [vmem:[%s1 + $0xf8] sm:$0xff]
  %v591 = vld [vmem:[%s4] sm:$0xff]
  %v592 = vld [vmem:[%s4 + $0x8] sm:$0xff]
  %v593 = vld [vmem:[%s4 + $0x10] sm:$0xff]
  %v594 = vld [vmem:[%s4 + $0x18] sm:$0xff]
  %v595 = vld [vmem:[%s5] sm:$0x1]
  %v597 = vlaneseq
  %v598 = vshrl.u32 %v597, 7
  %v599 = vsub.s32 0, %v598
  %v600 = vrot.slane %v595, %v599
  %v603 = vsel %vm63, %v527, 0
  %v606 = vsel %vm63, %v528, 0
  %v609 = vsel %vm63, %v529, 0
  %v612 = vsel %vm63, %v530, 0
  %v615 = vsel %vm63, %v531, 0
  %v618 = vsel %vm63, %v532, 0
  %v621 = vsel %vm63, %v533, 0
  %v624 = vsel %vm63, %v534, 0
  %v627 = vsel %vm63, %v535, 0
  %v630 = vsel %vm63, %v536, 0
  %v633 = vsel %vm63, %v537, 0
  %v636 = vsel %vm63, %v538, 0
  %v639 = vsel %vm63, %v539, 0
  %v642 = vsel %vm63, %v540, 0
  %v645 = vsel %vm63, %v541, 0
  %v648 = vsel %vm63, %v542, 0
  %v651 = vsel %vm63, %v543, 0
  %v654 = vsel %vm63, %v544, 0
  %v657 = vsel %vm63, %v545, 0
  %v660 = vsel %vm63, %v546, 0
  %v663 = vsel %vm63, %v547, 0
  %v666 = vsel %vm63, %v548, 0
  %v669 = vsel %vm63, %v549, 0
  %v672 = vsel %vm63, %v550, 0
  %v675 = vsel %vm63, %v551, 0
  %v678 = vsel %vm63, %v552, 0
  %v681 = vsel %vm63, %v553, 0
  %v684 = vsel %vm63, %v554, 0
  %v687 = vsel %vm63, %v555, 0
  %v690 = vsel %vm63, %v556, 0
  %v693 = vsel %vm63, %v557, 0
  %v696 = vsel %vm63, %v558, 0
  %698 = vmatprep.subr.mxu0 0.0
  %699 = vmatpush1.msra.mxu0 %v591
  %700 = vmatprep.subr.mxu0 0.0
  %701 = vmatpush1.msra.mxu0 %v592
  %702 = vmatprep.subr.mxu0 0.0
  %703 = vmatpush1.msra.mxu0 %v593
  %704 = vmatprep.subr.mxu0 0.0
  %705 = vmatpush1.msra.mxu0 %v594
  %706 = vmatprep.subr.mxu0 0.0
  %707 = vmatpush1.msra.mxu0 0.0
  %708 = vmatprep.subr.mxu0 0.0
  %709 = vmatpush1.msra.mxu0 0.0
  %710 = vmatprep.subr.mxu0 0.0
  %711 = vmatpush1.msra.mxu0 0.0
  %712 = vmatprep.subr.mxu0 0.0
  %713 = vmatpush1.msra.mxu0 0.0
  %714 = vmatprep.subr.mxu0 0.0
  %715 = vmatpush1.msra.mxu0 0.0
  %716 = vmatprep.subr.mxu0 0.0
  %717 = vmatpush1.msra.mxu0 0.0
  %718 = vmatprep.subr.mxu0 0.0
  %719 = vmatpush1.msra.mxu0 0.0
  %720 = vmatprep.subr.mxu0 0.0
  %721 = vmatpush1.msra.mxu0 0.0
  %722 = vmatprep.subr.mxu0 0.0
  %723 = vmatpush1.msra.mxu0 0.0
  %724 = vmatprep.subr.mxu0 0.0
  %725 = vmatpush1.msra.mxu0 0.0
  %726 = vmatprep.subr.mxu0 0.0
  %727 = vmatpush1.msra.mxu0 0.0
  %728 = vmatprep.subr.mxu0 0.0
  %729 = vmatpush1.msra.mxu0 0.0
  %730 = vmatprep.subr.mxu0 0.0
  %731 = vmatpush1.msra.mxu0 0.0
  %732 = vmatprep.subr.mxu0 0.0
  %733 = vmatpush1.msra.mxu0 0.0
  %734 = vmatprep.subr.mxu0 0.0
  %735 = vmatpush1.msra.mxu0 0.0
  %736 = vmatprep.subr.mxu0 0.0
  %737 = vmatpush1.msra.mxu0 0.0
  %738 = vmatprep.subr.mxu0 0.0
  %739 = vmatpush1.msra.mxu0 0.0
  %740 = vmatprep.subr.mxu0 0.0
  %741 = vmatpush1.msra.mxu0 0.0
  %742 = vmatprep.subr.mxu0 0.0
  %743 = vmatpush1.msra.mxu0 0.0
  %744 = vmatprep.subr.mxu0 0.0
  %745 = vmatpush1.msra.mxu0 0.0
  %746 = vmatprep.subr.mxu0 0.0
  %747 = vmatpush1.msra.mxu0 0.0
  %748 = vmatprep.subr.mxu0 0.0
  %749 = vmatpush1.msra.mxu0 0.0
  %750 = vmatprep.subr.mxu0 0.0
  %751 = vmatpush1.msra.mxu0 0.0
  %752 = vmatprep.subr.mxu0 0.0
  %753 = vmatpush1.msra.mxu0 0.0
  %754 = vmatprep.subr.mxu0 0.0
  %755 = vmatpush1.msra.mxu0 0.0
  %756 = vmatprep.subr.mxu0 0.0
  %757 = vmatpush1.msra.mxu0 0.0
  %758 = vmatprep.subr.mxu0 0.0
  %759 = vmatpush1.msra.mxu0 0.0
  %760 = vmatprep.subr.mxu0 0.0
  %761 = vmatpush1.msra.mxu0 0.0
  %762 = vmatprep.mubr.f32.mxu0 0.0
  %763 = vmatmul.mubr.f32.gmra.mrb[0].mxu0 %v603
  %v764 = vpop.f32.mrb[0].mxu0
  %v765 = vadd.f32 %v600, %v764
  %v766 = vpop.f32.mrb[0].mxu0
  %767 = vmatprep.mubr.f32.mxu0 0.0
  %768 = vmatmul.mubr.f32.gmra.mrb[0].mxu0 %v606
  %v769 = vpop.f32.mrb[0].mxu0
  %v770 = vadd.f32 %v600, %v769
  %v771 = vpop.f32.mrb[0].mxu0
  %772 = vmatprep.mubr.f32.mxu0 0.0
  %773 = vmatmul.mubr.f32.gmra.mrb[0].mxu0 %v609
  %v774 = vpop.f32.mrb[0].mxu0
  %v775 = vadd.f32 %v600, %v774
  %v776 = vpop.f32.mrb[0].mxu0
  %777 = vmatprep.mubr.f32.mxu0 0.0
  %778 = vmatmul.mubr.f32.gmra.mrb[0].mxu0 %v612
  %v779 = vpop.f32.mrb[0].mxu0
  %v780 = vadd.f32 %v600, %v779
  %v781 = vpop.f32.mrb[0].mxu0
  %782 = vmatprep.mubr.f32.mxu0 0.0
  %783 = vmatmul.mubr.f32.gmra.mrb[0].mxu0 %v615
  %v784 = vpop.f32.mrb[0].mxu0
  %v785 = vadd.f32 %v600, %v784
  %v786 = vpop.f32.mrb[0].mxu0
  %787 = vmatprep.mubr.f32.mxu0 0.0
  %788 = vmatmul.mubr.f32.gmra.mrb[0].mxu0 %v618
  %v789 = vpop.f32.mrb[0].mxu0
  %v790 = vadd.f32 %v600, %v789
  %v791 = vpop.f32.mrb[0].mxu0
  %792 = vmatprep.mubr.f32.mxu0 0.0
  %793 = vmatmul.mubr.f32.gmra.mrb[0].mxu0 %v621
  %v794 = vpop.f32.mrb[0].mxu0
  %v795 = vadd.f32 %v600, %v794
  %v796 = vpop.f32.mrb[0].mxu0
  %797 = vmatprep.mubr.f32.mxu0 0.0
  %798 = vmatmul.mubr.f32.gmra.mrb[0].mxu0 %v624
  %v799 = vpop.f32.mrb[0].mxu0
  %v800 = vadd.f32 %v600, %v799
  %v801 = vpop.f32.mrb[0].mxu0
  %802 = vmatprep.mubr.f32.mxu0 0.0
  %803 = vmatmul.mubr.f32.gmra.mrb[0].mxu0 %v627
  %v804 = vpop.f32.mrb[0].mxu0
  %v805 = vadd.f32 %v600, %v804
  %v806 = vpop.f32.mrb[0].mxu0
  %807 = vmatprep.mubr.f32.mxu0 0.0
  %808 = vmatmul.mubr.f32.gmra.mrb[0].mxu0 %v630
  %v809 = vpop.f32.mrb[0].mxu0
  %v810 = vadd.f32 %v600, %v809
  %v811 = vpop.f32.mrb[0].mxu0
  %812 = vmatprep.mubr.f32.mxu0 0.0
  %813 = vmatmul.mubr.f32.gmra.mrb[0].mxu0 %v633
  %v814 = vpop.f32.mrb[0].mxu0
  %v815 = vadd.f32 %v600, %v814
  %v816 = vpop.f32.mrb[0].mxu0
  %817 = vmatprep.mubr.f32.mxu0 0.0
  %818 = vmatmul.mubr.f32.gmra.mrb[0].mxu0 %v636
  %v819 = vpop.f32.mrb[0].mxu0
  %v820 = vadd.f32 %v600, %v819
  %v821 = vpop.f32.mrb[0].mxu0
  %822 = vmatprep.mubr.f32.mxu0 0.0
  %823 = vmatmul.mubr.f32.gmra.mrb[0].mxu0 %v639
  %v824 = vpop.f32.mrb[0].mxu0
  %v825 = vadd.f32 %v600, %v824
  %v826 = vpop.f32.mrb[0].mxu0
  %827 = vmatprep.mubr.f32.mxu0 0.0
  %828 = vmatmul.mubr.f32.gmra.mrb[0].mxu0 %v642
  %v829 = vpop.f32.mrb[0].mxu0
  %v830 = vadd.f32 %v600, %v829
  %v831 = vpop.f32.mrb[0].mxu0
  %832 = vmatprep.mubr.f32.mxu0 0.0
  %833 = vmatmul.mubr.f32.gmra.mrb[0].mxu0 %v645
  %v834 = vpop.f32.mrb[0].mxu0
  %v835 = vadd.f32 %v600, %v834
  %v836 = vpop.f32.mrb[0].mxu0
  %837 = vmatprep.mubr.f32.mxu0 0.0
  %838 = vmatmul.mubr.f32.gmra.mrb[0].mxu0 %v648
  %v839 = vpop.f32.mrb[0].mxu0
  %v840 = vadd.f32 %v600, %v839
  %v841 = vpop.f32.mrb[0].mxu0
  %842 = vmatprep.mubr.f32.mxu0 0.0
  %843 = vmatmul.mubr.f32.gmra.mrb[0].mxu0 %v651
  %v844 = vpop.f32.mrb[0].mxu0
  %v845 = vadd.f32 %v600, %v844
  %v846 = vpop.f32.mrb[0].mxu0
  %847 = vmatprep.mubr.f32.mxu0 0.0
  %848 = vmatmul.mubr.f32.gmra.mrb[0].mxu0 %v654
  %v849 = vpop.f32.mrb[0].mxu0
  %v850 = vadd.f32 %v600, %v849
  %v851 = vpop.f32.mrb[0].mxu0
  %852 = vmatprep.mubr.f32.mxu0 0.0
  %853 = vmatmul.mubr.f32.gmra.mrb[0].mxu0 %v657
  %v854 = vpop.f32.mrb[0].mxu0
  %v855 = vadd.f32 %v600, %v854
  %v856 = vpop.f32.mrb[0].mxu0
  %857 = vmatprep.mubr.f32.mxu0 0.0
  %858 = vmatmul.mubr.f32.gmra.mrb[0].mxu0 %v660
  %v859 = vpop.f32.mrb[0].mxu0
  %v860 = vadd.f32 %v600, %v859
  %v861 = vpop.f32.mrb[0].mxu0
  %862 = vmatprep.mubr.f32.mxu0 0.0
  %863 = vmatmul.mubr.f32.gmra.mrb[0].mxu0 %v663
  %v864 = vpop.f32.mrb[0].mxu0
  %v865 = vadd.f32 %v600, %v864
  %v866 = vpop.f32.mrb[0].mxu0
  %867 = vmatprep.mubr.f32.mxu0 0.0
  %868 = vmatmul.mubr.f32.gmra.mrb[0].mxu0 %v666
  %v869 = vpop.f32.mrb[0].mxu0
  %v870 = vadd.f32 %v600, %v869
  %v871 = vpop.f32.mrb[0].mxu0
  %872 = vmatprep.mubr.f32.mxu0 0.0
  %873 = vmatmul.mubr.f32.gmra.mrb[0].mxu0 %v669
  %v874 = vpop.f32.mrb[0].mxu0
  %v875 = vadd.f32 %v600, %v874
  %v876 = vpop.f32.mrb[0].mxu0
  %877 = vmatprep.mubr.f32.mxu0 0.0
  %878 = vmatmul.mubr.f32.gmra.mrb[0].mxu0 %v672
  %v879 = vpop.f32.mrb[0].mxu0
  %v880 = vadd.f32 %v600, %v879
  %v881 = vpop.f32.mrb[0].mxu0
  %882 = vmatprep.mubr.f32.mxu0 0.0
  %883 = vmatmul.mubr.f32.gmra.mrb[0].mxu0 %v675
  %v884 = vpop.f32.mrb[0].mxu0
  %v885 = vadd.f32 %v600, %v884
  %v886 = vpop.f32.mrb[0].mxu0
  %887 = vmatprep.mubr.f32.mxu0 0.0
  %888 = vmatmul.mubr.f32.gmra.mrb[0].mxu0 %v678
  %v889 = vpop.f32.mrb[0].mxu0
  %v890 = vadd.f32 %v600, %v889
  %v891 = vpop.f32.mrb[0].mxu0
  %892 = vmatprep.mubr.f32.mxu0 0.0
  %893 = vmatmul.mubr.f32.gmra.mrb[0].mxu0 %v681
  %v894 = vpop.f32.mrb[0].mxu0
  %v895 = vadd.f32 %v600, %v894
  %v896 = vpop.f32.mrb[0].mxu0
  %897 = vmatprep.mubr.f32.mxu0 0.0
  %898 = vmatmul.mubr.f32.gmra.mrb[0].mxu0 %v684
  %v899 = vpop.f32.mrb[0].mxu0
  %v900 = vadd.f32 %v600, %v899
  %v901 = vpop.f32.mrb[0].mxu0
  %902 = vmatprep.mubr.f32.mxu0 0.0
  %903 = vmatmul.mubr.f32.gmra.mrb[0].mxu0 %v687
  %v904 = vpop.f32.mrb[0].mxu0
  %v905 = vadd.f32 %v600, %v904
  %v906 = vpop.f32.mrb[0].mxu0
  %907 = vmatprep.mubr.f32.mxu0 0.0
  %908 = vmatmul.mubr.f32.gmra.mrb[0].mxu0 %v690
  %v909 = vpop.f32.mrb[0].mxu0
  %v910 = vadd.f32 %v600, %v909
  %v911 = vpop.f32.mrb[0].mxu0
  %912 = vmatprep.mubr.f32.mxu0 0.0
  %913 = vmatmul.mubr.f32.gmra.mrb[0].mxu0 %v693
  %v914 = vpop.f32.mrb[0].mxu0
  %v915 = vadd.f32 %v600, %v914
  %v916 = vpop.f32.mrb[0].mxu0
  %917 = vmatprep.mubr.f32.mxu0 0.0
  %918 = vmatmul.mubr.f32.gmra.mrb[0].mxu0 %v696
  %v919 = vpop.f32.mrb[0].mxu0
  %v920 = vadd.f32 %v600, %v919
  %v921 = vpop.f32.mrb[0].mxu0
  %922 = vdwg.mxu0
  %v923 = vld [vmem:[%s6] sm:$0xff]
  %v924 = vld [vmem:[%s6 + $0x8] sm:$0xff]
  %v925 = vld [vmem:[%s6 + $0x10] sm:$0xff]
  %v926 = vld [vmem:[%s6 + $0x18] sm:$0xff]
  %v927 = vld [vmem:[%s7] sm:$0x1]
  %v929 = vlaneseq
  %v930 = vshrl.u32 %v929, 7
  %v931 = vsub.s32 0, %v930
  %v932 = vrot.slane %v927, %v931
  %934 = vmatprep.subr.mxu0 0.0
  %935 = vmatpush1.msra.mxu0 %v923
  %936 = vmatprep.subr.mxu0 0.0
  %937 = vmatpush1.msra.mxu0 %v924
  %938 = vmatprep.subr.mxu0 0.0
  %939 = vmatpush1.msra.mxu0 %v925
  %940 = vmatprep.subr.mxu0 0.0
  %941 = vmatpush1.msra.mxu0 %v926
  %942 = vmatprep.subr.mxu0 0.0
  %943 = vmatpush1.msra.mxu0 0.0
  %944 = vmatprep.subr.mxu0 0.0
  %945 = vmatpush1.msra.mxu0 0.0
  %946 = vmatprep.subr.mxu0 0.0
  %947 = vmatpush1.msra.mxu0 0.0
  %948 = vmatprep.subr.mxu0 0.0
  %949 = vmatpush1.msra.mxu0 0.0
  %950 = vmatprep.subr.mxu0 0.0
  %951 = vmatpush1.msra.mxu0 0.0
  %952 = vmatprep.subr.mxu0 0.0
  %953 = vmatpush1.msra.mxu0 0.0
  %954 = vmatprep.subr.mxu0 0.0
  %955 = vmatpush1.msra.mxu0 0.0
  %956 = vmatprep.subr.mxu0 0.0
  %957 = vmatpush1.msra.mxu0 0.0
  %958 = vmatprep.subr.mxu0 0.0
  %959 = vmatpush1.msra.mxu0 0.0
  %960 = vmatprep.subr.mxu0 0.0
  %961 = vmatpush1.msra.mxu0 0.0
  %962 = vmatprep.subr.mxu0 0.0
  %963 = vmatpush1.msra.mxu0 0.0
  %964 = vmatprep.subr.mxu0 0.0
  %965 = vmatpush1.msra.mxu0 0.0
  %966 = vmatprep.subr.mxu0 0.0
  %967 = vmatpush1.msra.mxu0 0.0
  %968 = vmatprep.subr.mxu0 0.0
  %969 = vmatpush1.msra.mxu0 0.0
  %970 = vmatprep.subr.mxu0 0.0
  %971 = vmatpush1.msra.mxu0 0.0
  %972 = vmatprep.subr.mxu0 0.0
  %973 = vmatpush1.msra.mxu0 0.0
  %974 = vmatprep.subr.mxu0 0.0
  %975 = vmatpush1.msra.mxu0 0.0
  %976 = vmatprep.subr.mxu0 0.0
  %977 = vmatpush1.msra.mxu0 0.0
  %978 = vmatprep.subr.mxu0 0.0
  %979 = vmatpush1.msra.mxu0 0.0
  %980 = vmatprep.subr.mxu0 0.0
  %981 = vmatpush1.msra.mxu0 0.0
  %982 = vmatprep.subr.mxu0 0.0
  %983 = vmatpush1.msra.mxu0 0.0
  %984 = vmatprep.subr.mxu0 0.0
  %985 = vmatpush1.msra.mxu0 0.0
  %986 = vmatprep.subr.mxu0 0.0
  %987 = vmatpush1.msra.mxu0 0.0
  %988 = vmatprep.subr.mxu0 0.0
  %989 = vmatpush1.msra.mxu0 0.0
  %990 = vmatprep.subr.mxu0 0.0
  %991 = vmatpush1.msra.mxu0 0.0
  %992 = vmatprep.subr.mxu0 0.0
  %993 = vmatpush1.msra.mxu0 0.0
  %994 = vmatprep.subr.mxu0 0.0
  %995 = vmatpush1.msra.mxu0 0.0
  %996 = vmatprep.subr.mxu0 0.0
  %997 = vmatpush1.msra.mxu0 0.0
  %998 = vmatprep.mubr.f32.mxu0 0.0
  %999 = vmatmul.mubr.f32.gmra.mrb[0].mxu0 %v603
  %v1000 = vpop.f32.mrb[0].mxu0
  %v1001 = vadd.f32 %v932, %v1000
  %v1002 = vpop.f32.mrb[0].mxu0
  %1003 = vmatprep.mubr.f32.mxu0 0.0
  %1004 = vmatmul.mubr.f32.gmra.mrb[0].mxu0 %v606
  %v1005 = vpop.f32.mrb[0].mxu0
  %v1006 = vadd.f32 %v932, %v1005
  %v1007 = vpop.f32.mrb[0].mxu0
  %1008 = vmatprep.mubr.f32.mxu0 0.0
  %1009 = vmatmul.mubr.f32.gmra.mrb[0].mxu0 %v609
  %v1010 = vpop.f32.mrb[0].mxu0
  %v1011 = vadd.f32 %v932, %v1010
  %v1012 = vpop.f32.mrb[0].mxu0
  %1013 = vmatprep.mubr.f32.mxu0 0.0
  %1014 = vmatmul.mubr.f32.gmra.mrb[0].mxu0 %v612
  %v1015 = vpop.f32.mrb[0].mxu0
  %v1016 = vadd.f32 %v932, %v1015
  %v1017 = vpop.f32.mrb[0].mxu0
  %1018 = vmatprep.mubr.f32.mxu0 0.0
  %1019 = vmatmul.mubr.f32.gmra.mrb[0].mxu0 %v615
  %v1020 = vpop.f32.mrb[0].mxu0
  %v1021 = vadd.f32 %v932, %v1020
  %v1022 = vpop.f32.mrb[0].mxu0
  %1023 = vmatprep.mubr.f32.mxu0 0.0
  %1024 = vmatmul.mubr.f32.gmra.mrb[0].mxu0 %v618
  %v1025 = vpop.f32.mrb[0].mxu0
  %v1026 = vadd.f32 %v932, %v1025
  %v1027 = vpop.f32.mrb[0].mxu0
  %1028 = vmatprep.mubr.f32.mxu0 0.0
  %1029 = vmatmul.mubr.f32.gmra.mrb[0].mxu0 %v621
  %v1030 = vpop.f32.mrb[0].mxu0
  %v1031 = vadd.f32 %v932, %v1030
  %v1032 = vpop.f32.mrb[0].mxu0
  %1033 = vmatprep.mubr.f32.mxu0 0.0
  %1034 = vmatmul.mubr.f32.gmra.mrb[0].mxu0 %v624
  %v1035 = vpop.f32.mrb[0].mxu0
  %v1036 = vadd.f32 %v932, %v1035
  %v1037 = vpop.f32.mrb[0].mxu0
  %1038 = vmatprep.mubr.f32.mxu0 0.0
  %1039 = vmatmul.mubr.f32.gmra.mrb[0].mxu0 %v627
  %v1040 = vpop.f32.mrb[0].mxu0
  %v1041 = vadd.f32 %v932, %v1040
  %v1042 = vpop.f32.mrb[0].mxu0
  %1043 = vmatprep.mubr.f32.mxu0 0.0
  %1044 = vmatmul.mubr.f32.gmra.mrb[0].mxu0 %v630
  %v1045 = vpop.f32.mrb[0].mxu0
  %v1046 = vadd.f32 %v932, %v1045
  %v1047 = vpop.f32.mrb[0].mxu0
  %1048 = vmatprep.mubr.f32.mxu0 0.0
  %1049 = vmatmul.mubr.f32.gmra.mrb[0].mxu0 %v633
  %v1050 = vpop.f32.mrb[0].mxu0
  %v1051 = vadd.f32 %v932, %v1050
  %v1052 = vpop.f32.mrb[0].mxu0
  %1053 = vmatprep.mubr.f32.mxu0 0.0
  %1054 = vmatmul.mubr.f32.gmra.mrb[0].mxu0 %v636
  %v1055 = vpop.f32.mrb[0].mxu0
  %v1056 = vadd.f32 %v932, %v1055
  %v1057 = vpop.f32.mrb[0].mxu0
  %1058 = vmatprep.mubr.f32.mxu0 0.0
  %1059 = vmatmul.mubr.f32.gmra.mrb[0].mxu0 %v639
  %v1060 = vpop.f32.mrb[0].mxu0
  %v1061 = vadd.f32 %v932, %v1060
  %v1062 = vpop.f32.mrb[0].mxu0
  %1063 = vmatprep.mubr.f32.mxu0 0.0
  %1064 = vmatmul.mubr.f32.gmra.mrb[0].mxu0 %v642
  %v1065 = vpop.f32.mrb[0].mxu0
  %v1066 = vadd.f32 %v932, %v1065
  %v1067 = vpop.f32.mrb[0].mxu0
  %1068 = vmatprep.mubr.f32.mxu0 0.0
  %1069 = vmatmul.mubr.f32.gmra.mrb[0].mxu0 %v645
  %v1070 = vpop.f32.mrb[0].mxu0
  %v1071 = vadd.f32 %v932, %v1070
  %v1072 = vpop.f32.mrb[0].mxu0
  %1073 = vmatprep.mubr.f32.mxu0 0.0
  %1074 = vmatmul.mubr.f32.gmra.mrb[0].mxu0 %v648
  %v1075 = vpop.f32.mrb[0].mxu0
  %v1076 = vadd.f32 %v932, %v1075
  %v1077 = vpop.f32.mrb[0].mxu0
  %1078 = vmatprep.mubr.f32.mxu0 0.0
  %1079 = vmatmul.mubr.f32.gmra.mrb[0].mxu0 %v651
  %v1080 = vpop.f32.mrb[0].mxu0
  %v1081 = vadd.f32 %v932, %v1080
  %v1082 = vpop.f32.mrb[0].mxu0
  %1083 = vmatprep.mubr.f32.mxu0 0.0
  %1084 = vmatmul.mubr.f32.gmra.mrb[0].mxu0 %v654
  %v1085 = vpop.f32.mrb[0].mxu0
  %v1086 = vadd.f32 %v932, %v1085
  %v1087 = vpop.f32.mrb[0].mxu0
  %1088 = vmatprep.mubr.f32.mxu0 0.0
  %1089 = vmatmul.mubr.f32.gmra.mrb[0].mxu0 %v657
  %v1090 = vpop.f32.mrb[0].mxu0
  %v1091 = vadd.f32 %v932, %v1090
  %v1092 = vpop.f32.mrb[0].mxu0
  %1093 = vmatprep.mubr.f32.mxu0 0.0
  %1094 = vmatmul.mubr.f32.gmra.mrb[0].mxu0 %v660
  %v1095 = vpop.f32.mrb[0].mxu0
  %v1096 = vadd.f32 %v932, %v1095
  %v1097 = vpop.f32.mrb[0].mxu0
  %1098 = vmatprep.mubr.f32.mxu0 0.0
  %1099 = vmatmul.mubr.f32.gmra.mrb[0].mxu0 %v663
  %v1100 = vpop.f32.mrb[0].mxu0
  %v1101 = vadd.f32 %v932, %v1100
  %v1102 = vpop.f32.mrb[0].mxu0
  %1103 = vmatprep.mubr.f32.mxu0 0.0
  %1104 = vmatmul.mubr.f32.gmra.mrb[0].mxu0 %v666
  %v1105 = vpop.f32.mrb[0].mxu0
  %v1106 = vadd.f32 %v932, %v1105
  %v1107 = vpop.f32.mrb[0].mxu0
  %1108 = vmatprep.mubr.f32.mxu0 0.0
  %1109 = vmatmul.mubr.f32.gmra.mrb[0].mxu0 %v669
  %v1110 = vpop.f32.mrb[0].mxu0
  %v1111 = vadd.f32 %v932, %v1110
  %v1112 = vpop.f32.mrb[0].mxu0
  %1113 = vmatprep.mubr.f32.mxu0 0.0
  %1114 = vmatmul.mubr.f32.gmra.mrb[0].mxu0 %v672
  %v1115 = vpop.f32.mrb[0].mxu0
  %v1116 = vadd.f32 %v932, %v1115
  %v1117 = vpop.f32.mrb[0].mxu0
  %1118 = vmatprep.mubr.f32.mxu0 0.0
  %1119 = vmatmul.mubr.f32.gmra.mrb[0].mxu0 %v675
  %v1120 = vpop.f32.mrb[0].mxu0
  %v1121 = vadd.f32 %v932, %v1120
  %v1122 = vpop.f32.mrb[0].mxu0
  %1123 = vmatprep.mubr.f32.mxu0 0.0
  %1124 = vmatmul.mubr.f32.gmra.mrb[0].mxu0 %v678
  %v1125 = vpop.f32.mrb[0].mxu0
  %v1126 = vadd.f32 %v932, %v1125
  %v1127 = vpop.f32.mrb[0].mxu0
  %1128 = vmatprep.mubr.f32.mxu0 0.0
  %1129 = vmatmul.mubr.f32.gmra.mrb[0].mxu0 %v681
  %v1130 = vpop.f32.mrb[0].mxu0
  %v1131 = vadd.f32 %v932, %v1130
  %v1132 = vpop.f32.mrb[0].mxu0
  %1133 = vmatprep.mubr.f32.mxu0 0.0
  %1134 = vmatmul.mubr.f32.gmra.mrb[0].mxu0 %v684
  %v1135 = vpop.f32.mrb[0].mxu0
  %v1136 = vadd.f32 %v932, %v1135
  %v1137 = vpop.f32.mrb[0].mxu0
  %1138 = vmatprep.mubr.f32.mxu0 0.0
  %1139 = vmatmul.mubr.f32.gmra.mrb[0].mxu0 %v687
  %v1140 = vpop.f32.mrb[0].mxu0
  %v1141 = vadd.f32 %v932, %v1140
  %v1142 = vpop.f32.mrb[0].mxu0
  %1143 = vmatprep.mubr.f32.mxu0 0.0
  %1144 = vmatmul.mubr.f32.gmra.mrb[0].mxu0 %v690
  %v1145 = vpop.f32.mrb[0].mxu0
  %v1146 = vadd.f32 %v932, %v1145
  %v1147 = vpop.f32.mrb[0].mxu0
  %1148 = vmatprep.mubr.f32.mxu0 0.0
  %1149 = vmatmul.mubr.f32.gmra.mrb[0].mxu0 %v693
  %v1150 = vpop.f32.mrb[0].mxu0
  %v1151 = vadd.f32 %v932, %v1150
  %v1152 = vpop.f32.mrb[0].mxu0
  %1153 = vmatprep.mubr.f32.mxu0 0.0
  %1154 = vmatmul.mubr.f32.gmra.mrb[0].mxu0 %v696
  %v1155 = vpop.f32.mrb[0].mxu0
  %v1156 = vadd.f32 %v932, %v1155
  %v1157 = vpop.f32.mrb[0].mxu0
  %1158 = vdwg.mxu0
  %1160 = vset.pattern.permute.xlu0 0
  %1161 = vperm.xlu0 %1160, %v559
  %v1162 = vpop.permute.xlu0 %1161
  %1165 = vset.pattern.permute.xlu0 0
  %1166 = vperm.xlu0 %1165, %v560
  %v1167 = vpop.permute.xlu0 %1166
  %1170 = vset.pattern.permute.xlu0 0
  %1171 = vperm.xlu0 %1170, %v561
  %v1172 = vpop.permute.xlu0 %1171
  %1175 = vset.pattern.permute.xlu0 0
  %1176 = vperm.xlu0 %1175, %v562
  %v1177 = vpop.permute.xlu0 %1176
  %1180 = vset.pattern.permute.xlu0 0
  %1181 = vperm.xlu0 %1180, %v563
  %v1182 = vpop.permute.xlu0 %1181
  %1185 = vset.pattern.permute.xlu0 0
  %1186 = vperm.xlu0 %1185, %v564
  %v1187 = vpop.permute.xlu0 %1186
  %1190 = vset.pattern.permute.xlu0 0
  %1191 = vperm.xlu0 %1190, %v565
  %v1192 = vpop.permute.xlu0 %1191
  %1195 = vset.pattern.permute.xlu0 0
  %1196 = vperm.xlu0 %1195, %v566
  %v1197 = vpop.permute.xlu0 %1196
  %1200 = vset.pattern.permute.xlu0 0
  %1201 = vperm.xlu0 %1200, %v567
  %v1202 = vpop.permute.xlu0 %1201
  %1205 = vset.pattern.permute.xlu0 0
  %1206 = vperm.xlu0 %1205, %v568
  %v1207 = vpop.permute.xlu0 %1206
  %1210 = vset.pattern.permute.xlu0 0
  %1211 = vperm.xlu0 %1210, %v569
  %v1212 = vpop.permute.xlu0 %1211
  %1215 = vset.pattern.permute.xlu0 0
  %1216 = vperm.xlu0 %1215, %v570
  %v1217 = vpop.permute.xlu0 %1216
  %1220 = vset.pattern.permute.xlu0 0
  %1221 = vperm.xlu0 %1220, %v571
  %v1222 = vpop.permute.xlu0 %1221
  %1225 = vset.pattern.permute.xlu0 0
  %1226 = vperm.xlu0 %1225, %v572
  %v1227 = vpop.permute.xlu0 %1226
  %1230 = vset.pattern.permute.xlu0 0
  %1231 = vperm.xlu0 %1230, %v573
  %v1232 = vpop.permute.xlu0 %1231
  %1235 = vset.pattern.permute.xlu0 0
  %1236 = vperm.xlu0 %1235, %v574
  %v1237 = vpop.permute.xlu0 %1236
  %1240 = vset.pattern.permute.xlu0 0
  %1241 = vperm.xlu0 %1240, %v575
  %v1242 = vpop.permute.xlu0 %1241
  %1245 = vset.pattern.permute.xlu0 0
  %1246 = vperm.xlu0 %1245, %v576
  %v1247 = vpop.permute.xlu0 %1246
  %1250 = vset.pattern.permute.xlu0 0
  %1251 = vperm.xlu0 %1250, %v577
  %v1252 = vpop.permute.xlu0 %1251
  %1255 = vset.pattern.permute.xlu0 0
  %1256 = vperm.xlu0 %1255, %v578
  %v1257 = vpop.permute.xlu0 %1256
  %1260 = vset.pattern.permute.xlu0 0
  %1261 = vperm.xlu0 %1260, %v579
  %v1262 = vpop.permute.xlu0 %1261
  %1265 = vset.pattern.permute.xlu0 0
  %1266 = vperm.xlu0 %1265, %v580
  %v1267 = vpop.permute.xlu0 %1266
  %1270 = vset.pattern.permute.xlu0 0
  %1271 = vperm.xlu0 %1270, %v581
  %v1272 = vpop.permute.xlu0 %1271
  %1275 = vset.pattern.permute.xlu0 0
  %1276 = vperm.xlu0 %1275, %v582
  %v1277 = vpop.permute.xlu0 %1276
  %1280 = vset.pattern.permute.xlu0 0
  %1281 = vperm.xlu0 %1280, %v583
  %v1282 = vpop.permute.xlu0 %1281
  %1285 = vset.pattern.permute.xlu0 0
  %1286 = vperm.xlu0 %1285, %v584
  %v1287 = vpop.permute.xlu0 %1286
  %1290 = vset.pattern.permute.xlu0 0
  %1291 = vperm.xlu0 %1290, %v585
  %v1292 = vpop.permute.xlu0 %1291
  %1295 = vset.pattern.permute.xlu0 0
  %1296 = vperm.xlu0 %1295, %v586
  %v1297 = vpop.permute.xlu0 %1296
  %1300 = vset.pattern.permute.xlu0 0
  %1301 = vperm.xlu0 %1300, %v587
  %v1302 = vpop.permute.xlu0 %1301
  %1305 = vset.pattern.permute.xlu0 0
  %1306 = vperm.xlu0 %1305, %v588
  %v1307 = vpop.permute.xlu0 %1306
  %1310 = vset.pattern.permute.xlu0 0
  %1311 = vperm.xlu0 %1310, %v589
  %v1312 = vpop.permute.xlu0 %1311
  %1315 = vset.pattern.permute.xlu0 0
  %1316 = vperm.xlu0 %1315, %v590
  %v1317 = vpop.permute.xlu0 %1316
  %v1319 = vmul.f32 %v1162, %v765
  %v1320 = vmul.f32 %v1167, %v770
  %v1321 = vmul.f32 %v1172, %v775
  %v1322 = vmul.f32 %v1177, %v780
  %v1323 = vmul.f32 %v1182, %v785
  %v1324 = vmul.f32 %v1187, %v790
  %v1325 = vmul.f32 %v1192, %v795
  %v1326 = vmul.f32 %v1197, %v800
  %v1327 = vmul.f32 %v1202, %v805
  %v1328 = vmul.f32 %v1207, %v810
  %v1329 = vmul.f32 %v1212, %v815
  %v1330 = vmul.f32 %v1217, %v820
  %v1331 = vmul.f32 %v1222, %v825
  %v1332 = vmul.f32 %v1227, %v830
  %v1333 = vmul.f32 %v1232, %v835
  %v1334 = vmul.f32 %v1237, %v840
  %v1335 = vmul.f32 %v1242, %v845
  %v1336 = vmul.f32 %v1247, %v850
  %v1337 = vmul.f32 %v1252, %v855
  %v1338 = vmul.f32 %v1257, %v860
  %v1339 = vmul.f32 %v1262, %v865
  %v1340 = vmul.f32 %v1267, %v870
  %v1341 = vmul.f32 %v1272, %v875
  %v1342 = vmul.f32 %v1277, %v880
  %v1343 = vmul.f32 %v1282, %v885
  %v1344 = vmul.f32 %v1287, %v890
  %v1345 = vmul.f32 %v1292, %v895
  %v1346 = vmul.f32 %v1297, %v900
  %v1347 = vmul.f32 %v1302, %v905
  %v1348 = vmul.f32 %v1307, %v910
  %v1349 = vmul.f32 %v1312, %v915
  %v1350 = vmul.f32 %v1317, %v920
  %vm1351 = vcmask 64512
  %1352 = vst.msk [vmem:[%s8] sm:$0xff] %vm1351, %v1319
  %1353 = vst.msk [vmem:[%s8 + $0x8] sm:$0xff] %vm1351, %v1320
  %1354 = vst.msk [vmem:[%s8 + $0x10] sm:$0xff] %vm1351, %v1321
  %1355 = vst.msk [vmem:[%s8 + $0x18] sm:$0xff] %vm1351, %v1322
  %1356 = vst.msk [vmem:[%s8 + $0x20] sm:$0xff] %vm1351, %v1323
  %1357 = vst.msk [vmem:[%s8 + $0x28] sm:$0xff] %vm1351, %v1324
  %1358 = vst.msk [vmem:[%s8 + $0x30] sm:$0xff] %vm1351, %v1325
  %1359 = vst.msk [vmem:[%s8 + $0x38] sm:$0xff] %vm1351, %v1326
  %1360 = vst.msk [vmem:[%s8 + $0x40] sm:$0xff] %vm1351, %v1327
  %1361 = vst.msk [vmem:[%s8 + $0x48] sm:$0xff] %vm1351, %v1328
  %1362 = vst.msk [vmem:[%s8 + $0x50] sm:$0xff] %vm1351, %v1329
  %1363 = vst.msk [vmem:[%s8 + $0x58] sm:$0xff] %vm1351, %v1330
  %1364 = vst.msk [vmem:[%s8 + $0x60] sm:$0xff] %vm1351, %v1331
  %1365 = vst.msk [vmem:[%s8 + $0x68] sm:$0xff] %vm1351, %v1332
  %1366 = vst.msk [vmem:[%s8 + $0x70] sm:$0xff] %vm1351, %v1333
  %1367 = vst.msk [vmem:[%s8 + $0x78] sm:$0xff] %vm1351, %v1334
  %1368 = vst.msk [vmem:[%s8 + $0x80] sm:$0xff] %vm1351, %v1335
  %1369 = vst.msk [vmem:[%s8 + $0x88] sm:$0xff] %vm1351, %v1336
  %1370 = vst.msk [vmem:[%s8 + $0x90] sm:$0xff] %vm1351, %v1337
  %1371 = vst.msk [vmem:[%s8 + $0x98] sm:$0xff] %vm1351, %v1338
  %1372 = vst.msk [vmem:[%s8 + $0xa0] sm:$0xff] %vm1351, %v1339
  %1373 = vst.msk [vmem:[%s8 + $0xa8] sm:$0xff] %vm1351, %v1340
  %1374 = vst.msk [vmem:[%s8 + $0xb0] sm:$0xff] %vm1351, %v1341
  %1375 = vst.msk [vmem:[%s8 + $0xb8] sm:$0xff] %vm1351, %v1342
  %1376 = vst.msk [vmem:[%s8 + $0xc0] sm:$0xff] %vm1351, %v1343
  %1377 = vst.msk [vmem:[%s8 + $0xc8] sm:$0xff] %vm1351, %v1344
  %1378 = vst.msk [vmem:[%s8 + $0xd0] sm:$0xff] %vm1351, %v1345
  %1379 = vst.msk [vmem:[%s8 + $0xd8] sm:$0xff] %vm1351, %v1346
  %1380 = vst.msk [vmem:[%s8 + $0xe0] sm:$0xff] %vm1351, %v1347
  %1381 = vst.msk [vmem:[%s8 + $0xe8] sm:$0xff] %vm1351, %v1348
  %1382 = vst.msk [vmem:[%s8 + $0xf0] sm:$0xff] %vm1351, %v1349
  %1383 = vst.msk [vmem:[%s8 + $0xf8] sm:$0xff] %vm1351, %v1350
  %v1384 = vmul.f32 %v1162, %v1001
  %v1385 = vmul.f32 %v1167, %v1006
  %v1386 = vmul.f32 %v1172, %v1011
  %v1387 = vmul.f32 %v1177, %v1016
  %v1388 = vmul.f32 %v1182, %v1021
  %v1389 = vmul.f32 %v1187, %v1026
  %v1390 = vmul.f32 %v1192, %v1031
  %v1391 = vmul.f32 %v1197, %v1036
  %v1392 = vmul.f32 %v1202, %v1041
  %v1393 = vmul.f32 %v1207, %v1046
  %v1394 = vmul.f32 %v1212, %v1051
  %v1395 = vmul.f32 %v1217, %v1056
  %v1396 = vmul.f32 %v1222, %v1061
  %v1397 = vmul.f32 %v1227, %v1066
  %v1398 = vmul.f32 %v1232, %v1071
  %v1399 = vmul.f32 %v1237, %v1076
  %v1400 = vmul.f32 %v1242, %v1081
  %v1401 = vmul.f32 %v1247, %v1086
  %v1402 = vmul.f32 %v1252, %v1091
  %v1403 = vmul.f32 %v1257, %v1096
  %v1404 = vmul.f32 %v1262, %v1101
  %v1405 = vmul.f32 %v1267, %v1106
  %v1406 = vmul.f32 %v1272, %v1111
  %v1407 = vmul.f32 %v1277, %v1116
  %v1408 = vmul.f32 %v1282, %v1121
  %v1409 = vmul.f32 %v1287, %v1126
  %v1410 = vmul.f32 %v1292, %v1131
  %v1411 = vmul.f32 %v1297, %v1136
  %v1412 = vmul.f32 %v1302, %v1141
  %v1413 = vmul.f32 %v1307, %v1146
  %v1414 = vmul.f32 %v1312, %v1151
  %v1415 = vmul.f32 %v1317, %v1156
  %1416 = vst.msk [vmem:[%s9] sm:$0xff] %vm1351, %v1384
  %1417 = vst.msk [vmem:[%s9 + $0x8] sm:$0xff] %vm1351, %v1385
  %1418 = vst.msk [vmem:[%s9 + $0x10] sm:$0xff] %vm1351, %v1386
  %1419 = vst.msk [vmem:[%s9 + $0x18] sm:$0xff] %vm1351, %v1387
  %1420 = vst.msk [vmem:[%s9 + $0x20] sm:$0xff] %vm1351, %v1388
  %1421 = vst.msk [vmem:[%s9 + $0x28] sm:$0xff] %vm1351, %v1389
  %1422 = vst.msk [vmem:[%s9 + $0x30] sm:$0xff] %vm1351, %v1390
  %1423 = vst.msk [vmem:[%s9 + $0x38] sm:$0xff] %vm1351, %v1391
  %1424 = vst.msk [vmem:[%s9 + $0x40] sm:$0xff] %vm1351, %v1392
  %1425 = vst.msk [vmem:[%s9 + $0x48] sm:$0xff] %vm1351, %v1393
  %1426 = vst.msk [vmem:[%s9 + $0x50] sm:$0xff] %vm1351, %v1394
  %1427 = vst.msk [vmem:[%s9 + $0x58] sm:$0xff] %vm1351, %v1395
  %1428 = vst.msk [vmem:[%s9 + $0x60] sm:$0xff] %vm1351, %v1396
  %1429 = vst.msk [vmem:[%s9 + $0x68] sm:$0xff] %vm1351, %v1397
  %1430 = vst.msk [vmem:[%s9 + $0x70] sm:$0xff] %vm1351, %v1398
  %1431 = vst.msk [vmem:[%s9 + $0x78] sm:$0xff] %vm1351, %v1399
  %1432 = vst.msk [vmem:[%s9 + $0x80] sm:$0xff] %vm1351, %v1400
  %1433 = vst.msk [vmem:[%s9 + $0x88] sm:$0xff] %vm1351, %v1401
  %1434 = vst.msk [vmem:[%s9 + $0x90] sm:$0xff] %vm1351, %v1402
  %1435 = vst.msk [vmem:[%s9 + $0x98] sm:$0xff] %vm1351, %v1403
  %1436 = vst.msk [vmem:[%s9 + $0xa0] sm:$0xff] %vm1351, %v1404
  %1437 = vst.msk [vmem:[%s9 + $0xa8] sm:$0xff] %vm1351, %v1405
  %1438 = vst.msk [vmem:[%s9 + $0xb0] sm:$0xff] %vm1351, %v1406
  %1439 = vst.msk [vmem:[%s9 + $0xb8] sm:$0xff] %vm1351, %v1407
  %1440 = vst.msk [vmem:[%s9 + $0xc0] sm:$0xff] %vm1351, %v1408
  %1441 = vst.msk [vmem:[%s9 + $0xc8] sm:$0xff] %vm1351, %v1409
  %1442 = vst.msk [vmem:[%s9 + $0xd0] sm:$0xff] %vm1351, %v1410
  %1443 = vst.msk [vmem:[%s9 + $0xd8] sm:$0xff] %vm1351, %v1411
  %1444 = vst.msk [vmem:[%s9 + $0xe0] sm:$0xff] %vm1351, %v1412
  %1445 = vst.msk [vmem:[%s9 + $0xe8] sm:$0xff] %vm1351, %v1413
  %1446 = vst.msk [vmem:[%s9 + $0xf0] sm:$0xff] %vm1351, %v1414
  %1447 = vst.msk [vmem:[%s9 + $0xf8] sm:$0xff] %vm1351, %v1415
  // Predicated region
  $region34: #{tpu_custom_call.1} parent=0 // pred_check
    _
  $region35: #{tpu_custom_call.1} parent=0 // pred_check_branch
    %1449 = sbr.rel (0) target = $region37
  $region36: #{tpu_custom_call.1} parent=0 // pred_region
    _
  $region37: #{tpu_custom_call.1} parent=0 // pred_fallthru
    _
  // Predicated region
  $region38: #{tpu_custom_call.1} parent=0 // pred_check
    _
  $region39: #{tpu_custom_call.1} parent=0 // pred_check_branch
    %1451 = sbr.rel (0) target = $region41
  $region40: #{tpu_custom_call.1} parent=0 // pred_region
    _
  $region41: #{tpu_custom_call.1} parent=0 // pred_fallthru
    _
  // Predicated region
  $region42: #{tpu_custom_call.1} parent=0 // pred_check
    _
  $region43: #{tpu_custom_call.1} parent=0 // pred_check_branch
    %1453 = sbr.rel (0) target = $region45
  $region44: #{tpu_custom_call.1} parent=0 // pred_region
    _
  $region45: #{tpu_custom_call.1} parent=0 // pred_fallthru
    _
  // Predicated region
  $region46: #{tpu_custom_call.1} parent=0 // pred_check
    _
  $region47: #{tpu_custom_call.1} parent=0 // pred_check_branch
    %1455 = sbr.rel (0) target = $region49
  $region48: #{tpu_custom_call.1} parent=0 // pred_region
    _
  $region49: #{tpu_custom_call.1} parent=0 // pred_fallthru
    _

</llo_original>
